<compile_context>
chip_gen: v6e
topology: v6e:2x2x1
jax: 0.10.0
libtpu: 0.0.40
codegen_flags: <defaults>
</compile_context>

<pallas_src>
import functools
import math
import numpy as np
import jax
import jax.numpy as jnp
from jax.experimental import pallas as pl
from jax.experimental.pallas import tpu as pltpu

_LANE = 128


def _round_up(x, m):
    return (x + m - 1) // m * m


def pick_tiles(N, tm=1024, tk=1024):
    """Production default tiles, capped at the (128-aligned) problem size."""
    cap = _round_up(max(N, _LANE), _LANE)
    return min(tm, cap), min(tk, cap)


def ego_fits_vmem(n_pad, d_pad, budget_bytes=16 << 20):
    """Resident-ego budget (double-buffered bf16 copy); conservative for v7x."""
    return 2 * n_pad * d_pad * 2 <= budget_bytes


# ----------------------------------------------------------------------------
# Host-side (once per graph): pad, bf16-cast, and block-sparsity metadata.
# ----------------------------------------------------------------------------
def prepare_adjacency(adj, tm, tk):
    adj_np = np.asarray(jax.device_get(adj), dtype=np.float32)
    N = adj_np.shape[0]
    mult = tm * tk // math.gcd(tm, tk)
    n_pad = _round_up(max(N, mult), mult)
    adj_p = np.zeros((n_pad, n_pad), np.float32)
    adj_p[:N, :N] = adj_np

    n_row, n_col = n_pad // tm, n_pad // tk
    nz = (adj_p != 0.0).reshape(n_row, tm, n_col, tk).any(axis=(1, 3))
    cnt = nz.sum(axis=1).astype(np.int32)
    max_blocks = max(1, int(cnt.max()))
    blk = np.zeros((n_row, max_blocks), np.int32)
    for r in range(n_row):
        ids = np.flatnonzero(nz[r]).astype(np.int32)
        if ids.size:
            blk[r, :ids.size] = ids
            blk[r, ids.size:] = ids[-1]      # repeat last -> DMA dedup on padded steps

    adj_bf = jnp.asarray(adj_p).astype(jnp.bfloat16)
    return (adj_bf, jnp.asarray(blk.reshape(-1)), jnp.asarray(cnt),
            n_pad, max_blocks)


# ----------------------------------------------------------------------------
# Kernels
# ----------------------------------------------------------------------------
def _prop_layer_kernel(blk_ref, cnt_ref, adj_ref, ego_ref, accp_ref,
                       ego_out_ref, acc_out_ref, acc_sc, *,
                       tk, max_blocks, ego_resident):
    i = pl.program_id(0)
    j = pl.program_id(1)

    @pl.when(j == 0)
    def _():
        acc_sc[...] = jnp.zeros_like(acc_sc)

    @pl.when(j < cnt_ref[i])
    def _():
        if ego_resident:
            kb = blk_ref[i * max_blocks + j]
            start = pl.multiple_of(kb * tk, tk)
            ego_tile = ego_ref[pl.ds(start, tk), :]
        else:
            ego_tile = ego_ref[...]
        acc_sc[...] += jnp.dot(adj_ref[...], ego_tile,
                               preferred_element_type=jnp.float32)

    @pl.when(j == pl.num_programs(1) - 1)
    def _():
        ego_new = acc_sc[...]
        ego_out_ref[...] = ego_new.astype(ego_out_ref.dtype)   # bf16 inter-layer
        acc_out_ref[...] = accp_ref[...] + ego_new              # f32 running sum


def _final_layer_kernel(blk_ref, cnt_ref, adj_ref, ego_ref, accp_ref, w_ref,
                        b_ref, n1_ref, n2_ref, out1_ref, out2_ref, mean_ref,
                        std_ref, acc_sc, *, tk, max_blocks, ego_resident,
                        n_layers):
    i = pl.program_id(0)
    j = pl.program_id(1)

    @pl.when(j == 0)
    def _():
        acc_sc[...] = jnp.zeros_like(acc_sc)

    @pl.when(j < cnt_ref[i])
    def _():
        if ego_resident:
            kb = blk_ref[i * max_blocks + j]
            start = pl.multiple_of(kb * tk, tk)
            ego_tile = ego_ref[pl.ds(start, tk), :]
        else:
            ego_tile = ego_ref[...]
        acc_sc[...] += jnp.dot(adj_ref[...], ego_tile,
                               preferred_element_type=jnp.float32)

    @pl.when(j == pl.num_programs(1) - 1)
    def _():
        ego_new = acc_sc[...]
        mean = (accp_ref[...] + ego_new) * (1.0 / n_layers)
        # Variational head: logstd = mean @ W + b ; std = exp(logstd)
        logstd = jnp.dot(mean.astype(jnp.bfloat16), w_ref[...],
                         preferred_element_type=jnp.float32) + b_ref[...]
        std = jnp.exp(logstd)
        out1_ref[...] = mean + 0.01 * std * n1_ref[...].astype(jnp.float32)
        out2_ref[...] = mean + 0.01 * std * n2_ref[...].astype(jnp.float32)
        mean_ref[...] = mean
        std_ref[...] = std


# ----------------------------------------------------------------------------
# pallas_call wrappers
# ----------------------------------------------------------------------------
def _vmem_limit_bytes(tm, tk, n_pad, d_pad, ego_resident):
    bf, f4 = 2, 4
    ego_bytes = (n_pad * d_pad * bf) if ego_resident else (tk * d_pad * bf)
    work = (2 * tm * tk * bf                       # adj (double-buffered)
            + 2 * ego_bytes                        # ego
            + 2 * tm * d_pad * f4                  # acc_prev
            + 2 * (d_pad * d_pad * bf + d_pad * f4)  # W, b
            + 2 * 2 * tm * d_pad * bf              # noise1/2
            + 2 * (tm * d_pad * bf + 5 * tm * d_pad * f4)  # outputs (superset)
            + tm * d_pad * f4)                     # accumulator scratch
    return int(min(max(work * 3 // 2 + (4 << 20), 8 << 20), 100 << 20))


def _compiler_params(tm, tk, n_pad, d_pad, ego_resident):
    return pltpu.CompilerParams(
        dimension_semantics=("parallel", "arbitrary"),
        vmem_limit_bytes=_vmem_limit_bytes(tm, tk, n_pad, d_pad, ego_resident),
    )


def _adj_spec(tm, tk, max_blocks):
    return pl.BlockSpec((tm, tk),
                        lambda i, j, blk, cnt: (i, blk[i * max_blocks + j]))


def _ego_spec(tk, n_pad, d_pad, max_blocks, ego_resident):
    if ego_resident:
        return pl.BlockSpec((n_pad, d_pad), lambda i, j, blk, cnt: (0, 0))
    return pl.BlockSpec((tk, d_pad),
                        lambda i, j, blk, cnt: (blk[i * max_blocks + j], 0))


def _run_prop_layer(blk_idx, blk_cnt, adj_p, ego_bf, acc, *, tm, tk, n_pad,
                    d_pad, max_blocks, ego_resident):
    grid = (n_pad // tm, max_blocks)
    kernel = functools.partial(_prop_layer_kernel, tk=tk,
                               max_blocks=max_blocks, ego_resident=ego_resident)
    row_spec = pl.BlockSpec((tm, d_pad), lambda i, j, blk, cnt: (i, 0))
    return pl.pallas_call(
        kernel,
        out_shape=(
            jax.ShapeDtypeStruct((n_pad, d_pad), jnp.bfloat16),  # new ego (bf16)
            jax.ShapeDtypeStruct((n_pad, d_pad), jnp.float32),   # running layer sum
        ),
        grid_spec=pltpu.PrefetchScalarGridSpec(
            num_scalar_prefetch=2,
            grid=grid,
            in_specs=[
                _adj_spec(tm, tk, max_blocks),
                _ego_spec(tk, n_pad, d_pad, max_blocks, ego_resident),
                row_spec,                       # acc_prev (f32)
            ],
            out_specs=(row_spec, row_spec),
            scratch_shapes=[pltpu.VMEM((tm, d_pad), jnp.float32)],
        ),
        compiler_params=_compiler_params(tm, tk, n_pad, d_pad, ego_resident),
    )(blk_idx, blk_cnt, adj_p, ego_bf, acc)


def _run_final_layer(blk_idx, blk_cnt, adj_p, ego_bf, acc, w_p, b_p, n1_p,
                     n2_p, *, n_layers, tm, tk, n_pad, d_pad, max_blocks,
                     ego_resident):
    grid = (n_pad // tm, max_blocks)
    kernel = functools.partial(_final_layer_kernel, tk=tk,
                               max_blocks=max_blocks, ego_resident=ego_resident,
                               n_layers=n_layers)
    out = jax.ShapeDtypeStruct((n_pad, d_pad), jnp.float32)
    row_spec = pl.BlockSpec((tm, d_pad), lambda i, j, blk, cnt: (i, 0))
    return pl.pallas_call(
        kernel,
        out_shape=(out, out, out, out),      # noised1, noised2, mean, std
        grid_spec=pltpu.PrefetchScalarGridSpec(
            num_scalar_prefetch=2,
            grid=grid,
            in_specs=[
                _adj_spec(tm, tk, max_blocks),
                _ego_spec(tk, n_pad, d_pad, max_blocks, ego_resident),
                row_spec,                                              # acc_prev
                pl.BlockSpec((d_pad, d_pad), lambda i, j, blk, cnt: (0, 0)),  # W
                pl.BlockSpec((1, d_pad), lambda i, j, blk, cnt: (0, 0)),      # b
                row_spec,                                              # noise1 (bf16)
                row_spec,                                              # noise2 (bf16)
            ],
            out_specs=(row_spec, row_spec, row_spec, row_spec),
            scratch_shapes=[pltpu.VMEM((tm, d_pad), jnp.float32)],
        ),
        compiler_params=_compiler_params(tm, tk, n_pad, d_pad, ego_resident),
    )(blk_idx, blk_cnt, adj_p, ego_bf, acc, w_p, b_p, n1_p, n2_p)


def vgcl_forward(adj_p, blk_idx, blk_cnt, ego_emb, eps_weight, eps_bias,
                 noise1, noise2, *, num_user, n_layers, tm, tk, max_blocks,
                 ego_resident):
    """Equivalent of VGCL.forward(): graph_encoder + reparameterization + split.

    adj_p/blk_idx/blk_cnt come from prepare_adjacency() (computed once per
    graph, outside the jitted step).
    """
    N, D = ego_emb.shape
    n_pad = adj_p.shape[0]
    d_pad = _round_up(max(D, _LANE), _LANE)     # lane-dense feature dim

    ego = jnp.zeros((n_pad, d_pad), jnp.bfloat16).at[:N, :D].set(
        ego_emb.astype(jnp.bfloat16))
    w_p = jnp.zeros((d_pad, d_pad), jnp.bfloat16).at[:D, :D].set(
        eps_weight.astype(jnp.bfloat16))
    b_p = jnp.zeros((1, d_pad), jnp.float32).at[0, :D].set(
        eps_bias.reshape(-1).astype(jnp.float32))
    n1_p = jnp.zeros((n_pad, d_pad), jnp.bfloat16).at[:N, :D].set(
        noise1.astype(jnp.bfloat16))
    n2_p = jnp.zeros((n_pad, d_pad), jnp.bfloat16).at[:N, :D].set(
        noise2.astype(jnp.bfloat16))

    acc = jnp.zeros((n_pad, d_pad), jnp.float32)
    kw = dict(tm=tm, tk=tk, n_pad=n_pad, d_pad=d_pad, max_blocks=max_blocks,
              ego_resident=ego_resident)
    for _ in range(n_layers - 1):
        ego, acc = _run_prop_layer(blk_idx, blk_cnt, adj_p, ego, acc, **kw)

    noised1, noised2, mean, std = _run_final_layer(
        blk_idx, blk_cnt, adj_p, ego, acc, w_p, b_p, n1_p, n2_p,
        n_layers=n_layers, **kw)

    noised1 = noised1[:N, :D]
    noised2 = noised2[:N, :D]
    mean = mean[:N, :D]
    std = std[:N, :D]

    # forward() glue: split noised embeddings into user / item parts.
    user_emb, item_emb = noised1[:num_user], noised1[num_user:]
    user_emb_sub2, item_emb_sub2 = noised2[:num_user], noised2[num_user:]
    return user_emb, item_emb, user_emb_sub2, item_emb_sub2, mean, std


# ----------------------------------------------------------------------------
# Demo helpers
# ----------------------------------------------------------------------------
def xavier_uniform(key, shape):
    fan_in, fan_out = shape[-2], shape[-1]
    limit = float(np.sqrt(6.0 / (fan_in + fan_out)))
    return jax.random.uniform(key, shape, jnp.float32, -limit, limit)


def build_norm_adj(edge_index, num_user, num_item):
    """Dense equivalent of get_norm_adj_mat(): D^-1/2 (bipartite A) D^-1/2."""
    N = num_user + num_item
    A = np.zeros((N, N), dtype=np.float32)
    for u, i in edge_index:
        A[u, i] = 1.0
        A[i, u] = 1.0
    deg = (A > 0).sum(axis=1).astype(np.float32) + 1e-7
    d_inv_sqrt = np.power(deg, -0.5)
    L = (d_inv_sqrt[:, None] * A) * d_inv_sqrt[None, :]
    return jnp.asarray(L, dtype=jnp.float32)


if __name__ == "__main__":
    # Small synthetic problem consistent with the module's constructor.
    # tm=tk=128 so the demo exercises a real multi-tile, block-sparse grid
    # (production default via pick_tiles() would be 1024).
    num_user, num_item, dim_E, n_layers = 160, 160, 32, 2
    N = num_user + num_item
    tm, tk = 128, 128

    edges = []
    for u in range(num_user):
        edges.append((u, num_user + (u % num_item)))
        edges.append((u, num_user + ((u + 3) % num_item)))
    edge_index = np.array(edges, dtype=np.int64)

    adj = build_norm_adj(edge_index, num_user, num_item)

    # Hoisted out of the jitted forward: pad + bf16 cast + block-sparsity meta.
    adj_p, blk_idx, blk_cnt, n_pad, max_blocks = prepare_adjacency(adj, tm, tk)
    d_pad = _round_up(max(dim_E, _LANE), _LANE)
    ego_resident = ego_fits_vmem(n_pad, d_pad)

    key = jax.random.PRNGKey(0)
    k_user, k_item, k_w, k_n1, k_n2 = jax.random.split(key, 5)

    user_embedding = xavier_uniform(k_user, (num_user, dim_E))
    item_embedding = xavier_uniform(k_item, (num_item, dim_E))
    ego_emb = jnp.concatenate([user_embedding, item_embedding], axis=0)

    eps_weight = xavier_uniform(k_w, (dim_E, dim_E))
    eps_bias = jnp.zeros((dim_E,), jnp.float32)

    # Noise is passed in (matches torch.randn_like reparameterization).
    noise1 = jax.random.normal(k_n1, (N, dim_E), jnp.float32)
    noise2 = jax.random.normal(k_n2, (N, dim_E), jnp.float32)

    fwd = jax.jit(functools.partial(
        vgcl_forward, num_user=num_user, n_layers=n_layers, tm=tm, tk=tk,
        max_blocks=max_blocks, ego_resident=ego_resident))
    outs = fwd(adj_p, blk_idx, blk_cnt, ego_emb, eps_weight, eps_bias,
               noise1, noise2)
    jax.block_until_ready(outs)

    # Pure-JAX reference with the SAME numerics (bf16 adj/ego operands,
    # f32 accumulation, bf16 inter-layer ego, bf16 noise).
    adj_bf = adj.astype(jnp.bfloat16)
    ego_bf = ego_emb.astype(jnp.bfloat16)
    acc = jnp.zeros((N, dim_E), jnp.float32)
    for _ in range(n_layers):
        ego_f32 = jnp.dot(adj_bf, ego_bf, preferred_element_type=jnp.float32)
        acc = acc + ego_f32
        ego_bf = ego_f32.astype(jnp.bfloat16)
    mean_ref = acc / n_layers
    logstd_ref = jnp.dot(mean_ref.astype(jnp.bfloat16),
                         eps_weight.astype(jnp.bfloat16),
                         preferred_element_type=jnp.float32) + eps_bias
    std_ref = jnp.exp(logstd_ref)
    n1b = noise1.astype(jnp.bfloat16).astype(jnp.float32)
    n2b = noise2.astype(jnp.bfloat16).astype(jnp.float32)
    n1_ref = mean_ref + 0.01 * std_ref * n1b
    n2_ref = mean_ref + 0.01 * std_ref * n2b

    user_emb, item_emb, user_emb2, item_emb2, mean, std = outs
    np.testing.assert_allclose(np.asarray(mean), np.asarray(mean_ref),
                               rtol=1e-3, atol=1e-3)
    np.testing.assert_allclose(np.asarray(std), np.asarray(std_ref),
                               rtol=1e-3, atol=1e-3)
    np.testing.assert_allclose(
        np.asarray(jnp.concatenate([user_emb, item_emb], 0)),
        np.asarray(n1_ref), rtol=1e-3, atol=1e-3)
    np.testing.assert_allclose(
        np.asarray(jnp.concatenate([user_emb2, item_emb2], 0)),
        np.asarray(n2_ref), rtol=1e-3, atol=1e-3)

    print("KERNEL_OK")
</pallas_src>

<mosaic_0001>
module attributes {stable_mosaic.version = 11 : i64} {
  func.func @_prop_layer_kernel(%arg0: i32, %arg1: i32, %arg2: memref<9xi32, #tpu.memory_space<smem>>, %arg3: memref<3xi32, #tpu.memory_space<smem>>, %arg4: memref<128x128xbf16, #tpu.memory_space<vmem>>, %arg5: memref<384x128xbf16, #tpu.memory_space<vmem>>, %arg6: memref<128x128xf32, #tpu.memory_space<vmem>>, %arg7: memref<128x128xbf16, #tpu.memory_space<vmem>>, %arg8: memref<128x128xf32, #tpu.memory_space<vmem>>, %arg9: memref<128x128xf32, #tpu.memory_space<vmem>>) attributes {dimension_semantics = [#tpu.dimension_semantics<parallel>, #tpu.dimension_semantics<arbitrary>], iteration_bounds = array<i64: 3, 3>, scalar_prefetch = 2 : i64, scratch_operands = 1 : i64, tpu.core_type = #tpu.core_type<tc>, window_params = [{transform_indices = @transform_0, window_bounds = array<i64: 128, 128>}, {pipeline_mode = #tpu.pipeline_mode<synchronous>, transform_indices = @transform_1, window_bounds = array<i64: 384, 128>}, {transform_indices = @transform_2, window_bounds = array<i64: 128, 128>}, {transform_indices = @transform_3, window_bounds = array<i64: 128, 128>}, {transform_indices = @transform_4, window_bounds = array<i64: 128, 128>}]} {
    %c0_i32 = arith.constant 0 : i32
    %0 = arith.cmpi eq, %arg1, %c0_i32 : i32
    %1 = arith.extui %0 : i1 to i32
    %c0_i32_0 = arith.constant 0 : i32
    %2 = arith.cmpi ne, %1, %c0_i32_0 : i32
    scf.if %2 {
      %cst = arith.constant 0.000000e+00 : f32
      %11 = vector.broadcast %cst : f32 to vector<128x128xf32>
      %c0 = arith.constant 0 : index
      %c0_3 = arith.constant 0 : index
      %12 = vector.load %arg9[%c0, %c0_3] : memref<128x128xf32, #tpu.memory_space<vmem>>, vector<128x128xf32>
      tpu.vector_store %arg9[%c0, %c0_3], %11 {strides = array<i32>} : memref<128x128xf32, #tpu.memory_space<vmem>>, vector<128x128xf32>,
    } else {
    }
    %3 = arith.index_cast %arg0 : i32 to index
    %4 = memref.load %arg3[%3] : memref<3xi32, #tpu.memory_space<smem>>
    %5 = arith.cmpi slt, %arg1, %4 : i32
    %6 = arith.extui %5 : i1 to i32
    %c0_i32_1 = arith.constant 0 : i32
    %7 = arith.cmpi ne, %6, %c0_i32_1 : i32
    scf.if %7 {
      %c3_i32 = arith.constant 3 : i32
      %11 = arith.muli %arg0, %c3_i32 : i32
      %12 = arith.addi %11, %arg1 : i32
      %13 = arith.index_cast %12 : i32 to index
      %14 = memref.load %arg2[%13] : memref<9xi32, #tpu.memory_space<smem>>
      %c128_i32 = arith.constant 128 : i32
      %15 = arith.muli %14, %c128_i32 : i32
      %16 = tpu.assume_multiple %15, 128 : i32
      %17 = arith.index_cast %16 : i32 to index
      %c0 = arith.constant 0 : index
      %18 = vector.load %arg5[%17, %c0] : memref<384x128xbf16, #tpu.memory_space<vmem>>, vector<128x128xbf16>
      %c0_3 = arith.constant 0 : index
      %c0_4 = arith.constant 0 : index
      %19 = vector.load %arg9[%c0_3, %c0_4] : memref<128x128xf32, #tpu.memory_space<vmem>>, vector<128x128xf32>
      %c0_5 = arith.constant 0 : index
      %c0_6 = arith.constant 0 : index
      %20 = vector.load %arg4[%c0_5, %c0_6] : memref<128x128xbf16, #tpu.memory_space<vmem>>, vector<128x128xbf16>
      %cst = arith.constant dense<0.000000e+00> : vector<128x128xf32>
      %21 = tpu.matmul %20, %18, %cst {dimension_numbers = #tpu.dot_dimension_numbers<[1], [0], [0], [1], [0, 0, 1, 1], [], []>} : vector<128x128xbf16>, vector<128x128xbf16>, vector<128x128xf32> -> vector<128x128xf32>
      %22 = arith.addf %19, %21 : vector<128x128xf32>
      %c0_7 = arith.constant 0 : index
      %c0_8 = arith.constant 0 : index
      %23 = vector.load %arg9[%c0_7, %c0_8] : memref<128x128xf32, #tpu.memory_space<vmem>>, vector<128x128xf32>
      tpu.vector_store %arg9[%c0_7, %c0_8], %22 {strides = array<i32>} : memref<128x128xf32, #tpu.memory_space<vmem>>, vector<128x128xf32>,
    } else {
    }
    %c2_i32 = arith.constant 2 : i32
    %8 = arith.cmpi eq, %arg1, %c2_i32 : i32
    %9 = arith.extui %8 : i1 to i32
    %c0_i32_2 = arith.constant 0 : i32
    %10 = arith.cmpi ne, %9, %c0_i32_2 : i32
    scf.if %10 {
      %c0 = arith.constant 0 : index
      %c0_3 = arith.constant 0 : index
      %11 = vector.load %arg9[%c0, %c0_3] : memref<128x128xf32, #tpu.memory_space<vmem>>, vector<128x128xf32>
      %12 = arith.truncf %11 : vector<128x128xf32> to vector<128x128xbf16>
      %c0_4 = arith.constant 0 : index
      %c0_5 = arith.constant 0 : index
      %13 = vector.load %arg7[%c0_4, %c0_5] : memref<128x128xbf16, #tpu.memory_space<vmem>>, vector<128x128xbf16>
      tpu.vector_store %arg7[%c0_4, %c0_5], %12 {strides = array<i32>} : memref<128x128xbf16, #tpu.memory_space<vmem>>, vector<128x128xbf16>,
      %c0_6 = arith.constant 0 : index
      %c0_7 = arith.constant 0 : index
      %14 = vector.load %arg6[%c0_6, %c0_7] : memref<128x128xf32, #tpu.memory_space<vmem>>, vector<128x128xf32>
      %15 = arith.addf %14, %11 : vector<128x128xf32>
      %c0_8 = arith.constant 0 : index
      %c0_9 = arith.constant 0 : index
      %16 = vector.load %arg8[%c0_8, %c0_9] : memref<128x128xf32, #tpu.memory_space<vmem>>, vector<128x128xf32>
      tpu.vector_store %arg8[%c0_8, %c0_9], %15 {strides = array<i32>} : memref<128x128xf32, #tpu.memory_space<vmem>>, vector<128x128xf32>,
    } else {
    }
    return
  }
  func.func @transform_0(%arg0: i32, %arg1: i32, %arg2: memref<9xi32, #tpu.memory_space<smem>>, %arg3: memref<3xi32, #tpu.memory_space<smem>>) -> (i32, i32) {
    %c3_i32 = arith.constant 3 : i32
    %0 = arith.muli %arg0, %c3_i32 : i32
    %1 = arith.addi %0, %arg1 : i32
    %2 = arith.index_cast %1 : i32 to index
    %3 = memref.load %arg2[%2] : memref<9xi32, #tpu.memory_space<smem>>
    %c0_i32 = arith.constant 0 : i32
    return %arg0, %3 : i32, i32
  }
  func.func @transform_1(%arg0: i32, %arg1: i32, %arg2: memref<9xi32, #tpu.memory_space<smem>>, %arg3: memref<3xi32, #tpu.memory_space<smem>>) -> (i32, i32) {
    %c0_i32 = arith.constant 0 : i32
    %c0_i32_0 = arith.constant 0 : i32
    %c0_i32_1 = arith.constant 0 : i32
    return %c0_i32, %c0_i32_0 : i32, i32
  }
  func.func @transform_2(%arg0: i32, %arg1: i32, %arg2: memref<9xi32, #tpu.memory_space<smem>>, %arg3: memref<3xi32, #tpu.memory_space<smem>>) -> (i32, i32) {
    %c0_i32 = arith.constant 0 : i32
    %c0_i32_0 = arith.constant 0 : i32
    return %arg0, %c0_i32 : i32, i32
  }
  func.func @transform_3(%arg0: i32, %arg1: i32, %arg2: memref<9xi32, #tpu.memory_space<smem>>, %arg3: memref<3xi32, #tpu.memory_space<smem>>) -> (i32, i32) {
    %c0_i32 = arith.constant 0 : i32
    %c0_i32_0 = arith.constant 0 : i32
    return %arg0, %c0_i32 : i32, i32
  }
  func.func @transform_4(%arg0: i32, %arg1: i32, %arg2: memref<9xi32, #tpu.memory_space<smem>>, %arg3: memref<3xi32, #tpu.memory_space<smem>>) -> (i32, i32) {
    %c0_i32 = arith.constant 0 : i32
    %c0_i32_0 = arith.constant 0 : i32
    return %arg0, %c0_i32 : i32, i32
  }
}

module attributes {stable_mosaic.version = 11 : i64} {
  func.func @_final_layer_kernel(%arg0: i32, %arg1: i32, %arg2: memref<9xi32, #tpu.memory_space<smem>>, %arg3: memref<3xi32, #tpu.memory_space<smem>>, %arg4: memref<128x128xbf16, #tpu.memory_space<vmem>>, %arg5: memref<384x128xbf16, #tpu.memory_space<vmem>>, %arg6: memref<128x128xf32, #tpu.memory_space<vmem>>, %arg7: memref<128x128xbf16, #tpu.memory_space<vmem>>, %arg8: memref<1x128xf32, #tpu.memory_space<vmem>>, %arg9: memref<128x128xbf16, #tpu.memory_space<vmem>>, %arg10: memref<128x128xbf16, #tpu.memory_space<vmem>>, %arg11: memref<128x128xf32, #tpu.memory_space<vmem>>, %arg12: memref<128x128xf32, #tpu.memory_space<vmem>>, %arg13: memref<128x128xf32, #tpu.memory_space<vmem>>, %arg14: memref<128x128xf32, #tpu.memory_space<vmem>>, %arg15: memref<128x128xf32, #tpu.memory_space<vmem>>) attributes {dimension_semantics = [#tpu.dimension_semantics<parallel>, #tpu.dimension_semantics<arbitrary>], iteration_bounds = array<i64: 3, 3>, scalar_prefetch = 2 : i64, scratch_operands = 1 : i64, tpu.core_type = #tpu.core_type<tc>, window_params = [{transform_indices = @transform_0, window_bounds = array<i64: 128, 128>}, {pipeline_mode = #tpu.pipeline_mode<synchronous>, transform_indices = @transform_1, window_bounds = array<i64: 384, 128>}, {transform_indices = @transform_2, window_bounds = array<i64: 128, 128>}, {pipeline_mode = #tpu.pipeline_mode<synchronous>, transform_indices = @transform_3, window_bounds = array<i64: 128, 128>}, {pipeline_mode = #tpu.pipeline_mode<synchronous>, transform_indices = @transform_4, window_bounds = array<i64: 1, 128>}, {transform_indices = @transform_5, window_bounds = array<i64: 128, 128>}, {transform_indices = @transform_6, window_bounds = array<i64: 128, 128>}, {transform_indices = @transform_7, window_bounds = array<i64: 128, 128>}, {transform_indices = @transform_8, window_bounds = array<i64: 128, 128>}, {transform_indices = @transform_9, window_bounds = array<i64: 128, 128>}, {transform_indices = @transform_10, window_bounds = array<i64: 128, 128>}]} {
    %c0_i32 = arith.constant 0 : i32
    %0 = arith.cmpi eq, %arg1, %c0_i32 : i32
    %1 = arith.extui %0 : i1 to i32
    %c0_i32_0 = arith.constant 0 : i32
    %2 = arith.cmpi ne, %1, %c0_i32_0 : i32
    scf.if %2 {
      %cst = arith.constant 0.000000e+00 : f32
      %11 = vector.broadcast %cst : f32 to vector<128x128xf32>
      %c0 = arith.constant 0 : index
      %c0_3 = arith.constant 0 : index
      %12 = vector.load %arg15[%c0, %c0_3] : memref<128x128xf32, #tpu.memory_space<vmem>>, vector<128x128xf32>
      tpu.vector_store %arg15[%c0, %c0_3], %11 {strides = array<i32>} : memref<128x128xf32, #tpu.memory_space<vmem>>, vector<128x128xf32>,
    } else {
    }
    %3 = arith.index_cast %arg0 : i32 to index
    %4 = memref.load %arg3[%3] : memref<3xi32, #tpu.memory_space<smem>>
    %5 = arith.cmpi slt, %arg1, %4 : i32
    %6 = arith.extui %5 : i1 to i32
    %c0_i32_1 = arith.constant 0 : i32
    %7 = arith.cmpi ne, %6, %c0_i32_1 : i32
    scf.if %7 {
      %c3_i32 = arith.constant 3 : i32
      %11 = arith.muli %arg0, %c3_i32 : i32
      %12 = arith.addi %11, %arg1 : i32
      %13 = arith.index_cast %12 : i32 to index
      %14 = memref.load %arg2[%13] : memref<9xi32, #tpu.memory_space<smem>>
      %c128_i32 = arith.constant 128 : i32
      %15 = arith.muli %14, %c128_i32 : i32
      %16 = tpu.assume_multiple %15, 128 : i32
      %17 = arith.index_cast %16 : i32 to index
      %c0 = arith.constant 0 : index
      %18 = vector.load %arg5[%17, %c0] : memref<384x128xbf16, #tpu.memory_space<vmem>>, vector<128x128xbf16>
      %c0_3 = arith.constant 0 : index
      %c0_4 = arith.constant 0 : index
      %19 = vector.load %arg15[%c0_3, %c0_4] : memref<128x128xf32, #tpu.memory_space<vmem>>, vector<128x128xf32>
      %c0_5 = arith.constant 0 : index
      %c0_6 = arith.constant 0 : index
      %20 = vector.load %arg4[%c0_5, %c0_6] : memref<128x128xbf16, #tpu.memory_space<vmem>>, vector<128x128xbf16>
      %cst = arith.constant dense<0.000000e+00> : vector<128x128xf32>
      %21 = tpu.matmul %20, %18, %cst {dimension_numbers = #tpu.dot_dimension_numbers<[1], [0], [0], [1], [0, 0, 1, 1], [], []>} : vector<128x128xbf16>, vector<128x128xbf16>, vector<128x128xf32> -> vector<128x128xf32>
      %22 = arith.addf %19, %21 : vector<128x128xf32>
      %c0_7 = arith.constant 0 : index
      %c0_8 = arith.constant 0 : index
      %23 = vector.load %arg15[%c0_7, %c0_8] : memref<128x128xf32, #tpu.memory_space<vmem>>, vector<128x128xf32>
      tpu.vector_store %arg15[%c0_7, %c0_8], %22 {strides = array<i32>} : memref<128x128xf32, #tpu.memory_space<vmem>>, vector<128x128xf32>,
    } else {
    }
    %c2_i32 = arith.constant 2 : i32
    %8 = arith.cmpi eq, %arg1, %c2_i32 : i32
    %9 = arith.extui %8 : i1 to i32
    %c0_i32_2 = arith.constant 0 : i32
    %10 = arith.cmpi ne, %9, %c0_i32_2 : i32
    scf.if %10 {
      %c0 = arith.constant 0 : index
      %c0_3 = arith.constant 0 : index
      %11 = vector.load %arg15[%c0, %c0_3] : memref<128x128xf32, #tpu.memory_space<vmem>>, vector<128x128xf32>
      %c0_4 = arith.constant 0 : index
      %c0_5 = arith.constant 0 : index
      %12 = vector.load %arg6[%c0_4, %c0_5] : memref<128x128xf32, #tpu.memory_space<vmem>>, vector<128x128xf32>
      %13 = arith.addf %12, %11 : vector<128x128xf32>
      %cst = arith.constant 5.000000e-01 : f32
      %14 = vector.broadcast %cst : f32 to vector<128x128xf32>
      %15 = arith.mulf %13, %14 : vector<128x128xf32>
      %16 = arith.truncf %15 : vector<128x128xf32> to vector<128x128xbf16>
      %c0_6 = arith.constant 0 : index
      %c0_7 = arith.constant 0 : index
      %17 = vector.load %arg7[%c0_6, %c0_7] : memref<128x128xbf16, #tpu.memory_space<vmem>>, vector<128x128xbf16>
      %cst_8 = arith.constant dense<0.000000e+00> : vector<128x128xf32>
      %18 = tpu.matmul %16, %17, %cst_8 {dimension_numbers = #tpu.dot_dimension_numbers<[1], [0], [0], [1], [0, 0, 1, 1], [], []>} : vector<128x128xbf16>, vector<128x128xbf16>, vector<128x128xf32> -> vector<128x128xf32>
      %c0_9 = arith.constant 0 : index
      %c0_10 = arith.constant 0 : index
      %19 = vector.load %arg8[%c0_9, %c0_10] : memref<1x128xf32, #tpu.memory_space<vmem>>, vector<1x128xf32>
      %20 = vector.broadcast %19 : vector<1x128xf32> to vector<128x128xf32>
      %21 = arith.addf %18, %20 : vector<128x128xf32>
      %22 = math.exp %21 : vector<128x128xf32>
      %cst_11 = arith.constant 0.00999999977 : f32
      %23 = vector.broadcast %cst_11 : f32 to vector<128x128xf32>
      %24 = arith.mulf %23, %22 : vector<128x128xf32>
      %c0_12 = arith.constant 0 : index
      %c0_13 = arith.constant 0 : index
      %25 = vector.load %arg9[%c0_12, %c0_13] : memref<128x128xbf16, #tpu.memory_space<vmem>>, vector<128x128xbf16>
      %26 = arith.extf %25 : vector<128x128xbf16> to vector<128x128xf32>
      %27 = arith.mulf %24, %26 : vector<128x128xf32>
      %28 = arith.addf %15, %27 : vector<128x128xf32>
      %c0_14 = arith.constant 0 : index
      %c0_15 = arith.constant 0 : index
      %29 = vector.load %arg11[%c0_14, %c0_15] : memref<128x128xf32, #tpu.memory_space<vmem>>, vector<128x128xf32>
      tpu.vector_store %arg11[%c0_14, %c0_15], %28 {strides = array<i32>} : memref<128x128xf32, #tpu.memory_space<vmem>>, vector<128x128xf32>,
      %cst_16 = arith.constant 0.00999999977 : f32
      %30 = vector.broadcast %cst_16 : f32 to vector<128x128xf32>
      %31 = arith.mulf %30, %22 : vector<128x128xf32>
      %c0_17 = arith.constant 0 : index
      %c0_18 = arith.constant 0 : index
      %32 = vector.load %arg10[%c0_17, %c0_18] : memref<128x128xbf16, #tpu.memory_space<vmem>>, vector<128x128xbf16>
      %33 = arith.extf %32 : vector<128x128xbf16> to vector<128x128xf32>
      %34 = arith.mulf %31, %33 : vector<128x128xf32>
      %35 = arith.addf %15, %34 : vector<128x128xf32>
      %c0_19 = arith.constant 0 : index
      %c0_20 = arith.constant 0 : index
      %36 = vector.load %arg12[%c0_19, %c0_20] : memref<128x128xf32, #tpu.memory_space<vmem>>, vector<128x128xf32>
      tpu.vector_store %arg12[%c0_19, %c0_20], %35 {strides = array<i32>} : memref<128x128xf32, #tpu.memory_space<vmem>>, vector<128x128xf32>,
      %c0_21 = arith.constant 0 : index
      %c0_22 = arith.constant 0 : index
      %37 = vector.load %arg13[%c0_21, %c0_22] : memref<128x128xf32, #tpu.memory_space<vmem>>, vector<128x128xf32>
      tpu.vector_store %arg13[%c0_21, %c0_22], %15 {strides = array<i32>} : memref<128x128xf32, #tpu.memory_space<vmem>>, vector<128x128xf32>,
      %c0_23 = arith.constant 0 : index
      %c0_24 = arith.constant 0 : index
      %38 = vector.load %arg14[%c0_23, %c0_24] : memref<128x128xf32, #tpu.memory_space<vmem>>, vector<128x128xf32>
      tpu.vector_store %arg14[%c0_23, %c0_24], %22 {strides = array<i32>} : memref<128x128xf32, #tpu.memory_space<vmem>>, vector<128x128xf32>,
    } else {
    }
    return
  }
  func.func @transform_0(%arg0: i32, %arg1: i32, %arg2: memref<9xi32, #tpu.memory_space<smem>>, %arg3: memref<3xi32, #tpu.memory_space<smem>>) -> (i32, i32) {
    %c3_i32 = arith.constant 3 : i32
    %0 = arith.muli %arg0, %c3_i32 : i32
    %1 = arith.addi %0, %arg1 : i32
    %2 = arith.index_cast %1 : i32 to index
    %3 = memref.load %arg2[%2] : memref<9xi32, #tpu.memory_space<smem>>
    %c0_i32 = arith.constant 0 : i32
    return %arg0, %3 : i32, i32
  }
  func.func @transform_1(%arg0: i32, %arg1: i32, %arg2: memref<9xi32, #tpu.memory_space<smem>>, %arg3: memref<3xi32, #tpu.memory_space<smem>>) -> (i32, i32) {
    %c0_i32 = arith.constant 0 : i32
    %c0_i32_0 = arith.constant 0 : i32
    %c0_i32_1 = arith.constant 0 : i32
    return %c0_i32, %c0_i32_0 : i32, i32
  }
  func.func @transform_2(%arg0: i32, %arg1: i32, %arg2: memref<9xi32, #tpu.memory_space<smem>>, %arg3: memref<3xi32, #tpu.memory_space<smem>>) -> (i32, i32) {
    %c0_i32 = arith.constant 0 : i32
    %c0_i32_0 = arith.constant 0 : i32
    return %arg0, %c0_i32 : i32, i32
  }
  func.func @transform_3(%arg0: i32, %arg1: i32, %arg2: memref<9xi32, #tpu.memory_space<smem>>, %arg3: memref<3xi32, #tpu.memory_space<smem>>) -> (i32, i32) {
    %c0_i32 = arith.constant 0 : i32
    %c0_i32_0 = arith.constant 0 : i32
    %c0_i32_1 = arith.constant 0 : i32
    return %c0_i32, %c0_i32_0 : i32, i32
  }
  func.func @transform_4(%arg0: i32, %arg1: i32, %arg2: memref<9xi32, #tpu.memory_space<smem>>, %arg3: memref<3xi32, #tpu.memory_space<smem>>) -> (i32, i32) {
    %c0_i32 = arith.constant 0 : i32
    %c0_i32_0 = arith.constant 0 : i32
    %c0_i32_1 = arith.constant 0 : i32
    return %c0_i32, %c0_i32_0 : i32, i32
  }
  func.func @transform_5(%arg0: i32, %arg1: i32, %arg2: memref<9xi32, #tpu.memory_space<smem>>, %arg3: memref<3xi32, #tpu.memory_space<smem>>) -> (i32, i32) {
    %c0_i32 = arith.constant 0 : i32
    %c0_i32_0 = arith.constant 0 : i32
    return %arg0, %c0_i32 : i32, i32
  }
  func.func @transform_6(%arg0: i32, %arg1: i32, %arg2: memref<9xi32, #tpu.memory_space<smem>>, %arg3: memref<3xi32, #tpu.memory_space<smem>>) -> (i32, i32) {
    %c0_i32 = arith.constant 0 : i32
    %c0_i32_0 = arith.constant 0 : i32
    return %arg0, %c0_i32 : i32, i32
  }
  func.func @transform_7(%arg0: i32, %arg1: i32, %arg2: memref<9xi32, #tpu.memory_space<smem>>, %arg3: memref<3xi32, #tpu.memory_space<smem>>) -> (i32, i32) {
    %c0_i32 = arith.constant 0 : i32
    %c0_i32_0 = arith.constant 0 : i32
    return %arg0, %c0_i32 : i32, i32
  }
  func.func @transform_8(%arg0: i32, %arg1: i32, %arg2: memref<9xi32, #tpu.memory_space<smem>>, %arg3: memref<3xi32, #tpu.memory_space<smem>>) -> (i32, i32) {
    %c0_i32 = arith.constant 0 : i32
    %c0_i32_0 = arith.constant 0 : i32
    return %arg0, %c0_i32 : i32, i32
  }
  func.func @transform_9(%arg0: i32, %arg1: i32, %arg2: memref<9xi32, #tpu.memory_space<smem>>, %arg3: memref<3xi32, #tpu.memory_space<smem>>) -> (i32, i32) {
    %c0_i32 = arith.constant 0 : i32
    %c0_i32_0 = arith.constant 0 : i32
    return %arg0, %c0_i32 : i32, i32
  }
  func.func @transform_10(%arg0: i32, %arg1: i32, %arg2: memref<9xi32, #tpu.memory_space<smem>>, %arg3: memref<3xi32, #tpu.memory_space<smem>>) -> (i32, i32) {
    %c0_i32 = arith.constant 0 : i32
    %c0_i32_0 = arith.constant 0 : i32
    return %arg0, %c0_i32 : i32, i32
  }
}

</mosaic_0001>

<llo_original>
// kernel: vgcl_forward.2
$region0: #{vgcl_forward.2}
  #allocation0 [shape = 'u32[]', space=smem, size = 0x4, offset = 0x4, fixed_abs, tag = 'smem constant byte address 0x4 - core index']
  #allocation1 [shape = 'u32[144,128]{1,0:T(1,128)}', space=vmem, size = 0x12000, scoped, tag = 'internal scratch']
  #allocation2 [shape = 'f32[128,128]{1,0:T(8,128)}', space=vmem, size = 0x10000, scoped, tag = 'scratch operand']
  #allocation3 [shape = 's32[1]{0}', space=sflag, size = 0x4, scoped, tag = 'scoped memory for vgcl_forward.2']
  #allocation4 [shape = 'u8[512]{0}', space=smem, size = 0x200, scoped, tag = 'prefetched SMEM operand 0']
  #allocation5 [shape = 'u8[512]{0}', space=smem, size = 0x200, scoped, tag = 'prefetched SMEM operand 1']
  %s0 = inlined_call_operand.vmem [shape: s32[9], index: 0, kind: input, shape index: {}]
  %s1 = inlined_call_operand.vmem [shape: s32[3], index: 1, kind: input, shape index: {}]
  %s2 = inlined_call_operand.vmem [shape: bf16[384,384], index: 2, kind: input, shape index: {}]
  %s3 = inlined_call_operand.vmem [shape: bf16[384,128], index: 3, kind: input, shape index: {}]
  %s4 = inlined_call_operand.vmem [shape: f32[384,128], index: 4, kind: input, shape index: {}]
  %s5 = inlined_call_operand.vmem [shape: bf16[384,128], index: 5, kind: output, shape index: {0}]
  %s6 = inlined_call_operand.vmem [shape: f32[384,128], index: 6, kind: output, shape index: {1}]
  %7 = xla_tuple %s5, %s6
  %s8 = sld [smem:[#allocation0]]
  $region106: #{vgcl_forward.2} parent=0
    _
  %s10 = ssub.s32 1, %s8
  %s11 = scalar_select 0, %s10, %s8
  %s12 = sshll.u32 %s0, 4
  %s13 = int_to_ptr.vmem [resolvable:$true] %s12
  %15 = dma.vmem_to_smem %s13, 16, [#allocation4], [#allocation3]
  %s16 = sshll.u32 %s1, 4
  %s17 = int_to_ptr.vmem [resolvable:$true] %s16
  %19 = dma.vmem_to_smem %s17, 16, [#allocation5], [#allocation3]
  %20 = dma.done [#allocation3], 32
  %21 = sfence
  $region1: #{vgcl_forward.2} parent=0
    #allocation6 [shape = 'u8[65536]{0}', space=vmem, size = 0x10000, scoped, tag = 'input window, operand 2']
    loop: start=0, step=1, limit=11
    $region2: #{vgcl_forward.2} parent=1 // loop_pre_header
      _
    $region3: #{vgcl_forward.2} parent=1 // loop_header
      %s23 = sphi 0, %s27
      %p24 = scmp.ge.s32.totalorder %s23, 11
      %s30 = sphi 0, %s42
      %s31 = sphi 0, %s38
      %s32 = sphi 0, %s30
      %s33 = sphi 0, %s31
      %s34 = sphi 0, %s32
      %s35 = sphi 0, %s33
      %s53 = sphi 0, %s55
      %s56 = sphi 0, %s53
      %s57 = sphi 0, %s56
      %s73 = sphi 0, %s57
      %s77 = sphi 0, %s77
      %s79 = sphi 0, %s77
      %s80 = sphi 0, %s79
      %s94 = sphi 0, %s80
      %s100 = sphi 0, %s102
      %s103 = sphi 0, %s100
      %s104 = sphi 0, %s103
      %s120 = sphi 0, %s104
      %s126 = sphi 0, %s128
      %s129 = sphi 0, %s126
      %s130 = sphi 0, %s129
      %s146 = sphi 0, %s130
      %s152 = sphi 0, %s154
      %s155 = sphi 0, %s152
      %s156 = sphi 0, %s155
      %s172 = sphi 0, %s156
    $region4: #{vgcl_forward.2} parent=1 // loop_header_branch
      %26 = sbr.rel (%p24) target = $region8
    $region5: #{vgcl_forward.2} parent=1 // loop_body
      %s28 = ssub.s32 %s23, 1
      %s29 = ssub.s32 %s23, 2
      %s36 = sadd.s32 1, %s31
      %p37 = scmp.ge.s32.totalorder %s36, 3
      %s38 = scalar_select %p37, 0, %s36
      %s39 = sadd.s32 1, %s30
      %s40 = scalar_select %p37, %s39, %s30
      %p41 = scmp.ge.s32.totalorder %s40, 3
      %s42 = scalar_select %p41, 0, %s40
      %s43 = smul.u32 %s30, 3
      %s44 = sadd.s32 %s43, %s31
      %s45 = sld [smem:[#allocation4 + %s44]]
      %s46 = smul.u32 %s42, 3
      %s47 = sadd.s32 %s46, %s38
      %s48 = sld [smem:[#allocation4 + %s47]]
      %s49 = ssub.s32 %s30, %s42
      %s50 = ssub.s32 %s45, %s48
      %s51 = sor.u32 %s49, %s50
      %p52 = scmp.eq.s32.totalorder %s51, 0
      %s54 = sadd.s32 %s53, 1
      %s55 = scalar_select %p52, %s53, %s54
      %p58 = pneg %p52
      %p59 = scmp.eq.s32.totalorder %s23, 8
      %p60 = por %p58, %p59
      %p61 = scmp.ne.s32.totalorder %s53, %s56
      %p62 = scmp.eq.s32.totalorder %s23, 0
      %p63 = por %p61, %p62
      %p64 = scmp.ne.s32.totalorder %s53, %s56
      %p65 = scmp.eq.s32.totalorder %s28, 8
      %p66 = por %p64, %p65
      %p67 = scmp.ne.s32.totalorder %s56, %s57
      %p68 = scmp.eq.s32.totalorder %s28, 0
      %p69 = por %p67, %p68
      %p70 = scmp.ne.s32.totalorder %s56, %s57
      %p71 = scmp.eq.s32.totalorder %s29, 8
      %p72 = por %p70, %p71
      %p74 = scmp.ne.s32.totalorder %s57, %s73
      %p75 = scmp.eq.s32.totalorder %s29, 0
      %p76 = por %p74, %p75
      %s78 = sadd.s32 %s77, 1
      %p81 = scmp.eq.s32.totalorder %s23, 8
      %p82 = scmp.ne.s32.totalorder %s77, %s79
      %p83 = scmp.eq.s32.totalorder %s23, 0
      %p84 = por %p82, %p83
      %p85 = scmp.ne.s32.totalorder %s77, %s79
      %p86 = scmp.eq.s32.totalorder %s28, 8
      %p87 = por %p85, %p86
      %p88 = scmp.ne.s32.totalorder %s79, %s80
      %p89 = scmp.eq.s32.totalorder %s28, 0
      %p90 = por %p88, %p89
      %p91 = scmp.ne.s32.totalorder %s79, %s80
      %p92 = scmp.eq.s32.totalorder %s29, 8
      %p93 = por %p91, %p92
      %p95 = scmp.ne.s32.totalorder %s80, %s94
      %p96 = scmp.eq.s32.totalorder %s29, 0
      %p97 = por %p95, %p96
      %s98 = ssub.s32 %s30, %s42
      %p99 = scmp.eq.s32.totalorder %s98, 0
      %s101 = sadd.s32 %s100, 1
      %s102 = scalar_select %p99, %s100, %s101
      %p105 = pneg %p99
      %p106 = scmp.eq.s32.totalorder %s23, 8
      %p107 = por %p105, %p106
      %p108 = scmp.ne.s32.totalorder %s100, %s103
      %p109 = scmp.eq.s32.totalorder %s23, 0
      %p110 = por %p108, %p109
      %p111 = scmp.ne.s32.totalorder %s100, %s103
      %p112 = scmp.eq.s32.totalorder %s28, 8
      %p113 = por %p111, %p112
      %p114 = scmp.ne.s32.totalorder %s103, %s104
      %p115 = scmp.eq.s32.totalorder %s28, 0
      %p116 = por %p114, %p115
      %p117 = scmp.ne.s32.totalorder %s103, %s104
      %p118 = scmp.eq.s32.totalorder %s29, 8
      %p119 = por %p117, %p118
      %p121 = scmp.ne.s32.totalorder %s104, %s120
      %p122 = scmp.eq.s32.totalorder %s29, 0
      %p123 = por %p121, %p122
      %s124 = ssub.s32 %s30, %s42
      %p125 = scmp.eq.s32.totalorder %s124, 0
      %s127 = sadd.s32 %s126, 1
      %s128 = scalar_select %p125, %s126, %s127
      %p131 = pneg %p125
      %p132 = scmp.eq.s32.totalorder %s23, 8
      %p133 = por %p131, %p132
      %p134 = scmp.ne.s32.totalorder %s126, %s129
      %p135 = scmp.eq.s32.totalorder %s23, 0
      %p136 = por %p134, %p135
      %p137 = scmp.ne.s32.totalorder %s126, %s129
      %p138 = scmp.eq.s32.totalorder %s28, 8
      %p139 = por %p137, %p138
      %p140 = scmp.ne.s32.totalorder %s129, %s130
      %p141 = scmp.eq.s32.totalorder %s28, 0
      %p142 = por %p140, %p141
      %p143 = scmp.ne.s32.totalorder %s129, %s130
      %p144 = scmp.eq.s32.totalorder %s29, 8
      %p145 = por %p143, %p144
      %p147 = scmp.ne.s32.totalorder %s130, %s146
      %p148 = scmp.eq.s32.totalorder %s29, 0
      %p149 = por %p147, %p148
      %s150 = ssub.s32 %s30, %s42
      %p151 = scmp.eq.s32.totalorder %s150, 0
      %s153 = sadd.s32 %s152, 1
      %s154 = scalar_select %p151, %s152, %s153
      %p157 = pneg %p151
      %p158 = scmp.eq.s32.totalorder %s23, 8
      %p159 = por %p157, %p158
      %p160 = scmp.ne.s32.totalorder %s152, %s155
      %p161 = scmp.eq.s32.totalorder %s23, 0
      %p162 = por %p160, %p161
      %p163 = scmp.ne.s32.totalorder %s152, %s155
      %p164 = scmp.eq.s32.totalorder %s28, 8
      %p165 = por %p163, %p164
      %p166 = scmp.ne.s32.totalorder %s155, %s156
      %p167 = scmp.eq.s32.totalorder %s28, 0
      %p168 = por %p166, %p167
      %p169 = scmp.ne.s32.totalorder %s155, %s156
      %p170 = scmp.eq.s32.totalorder %s29, 8
      %p171 = por %p169, %p170
      %p173 = scmp.ne.s32.totalorder %s156, %s172
      %p174 = scmp.eq.s32.totalorder %s29, 0
      %p175 = por %p173, %p174
      %p176 = scmp.le.s32.totalorder 1, %s23
      %p177 = scmp.lt.s32.totalorder %s23, 10
      %p178 = pnand %p176, %p177
      %p179 = pneg %p178
      // Predicated region
      $region9: #{vgcl_forward.2} parent=5 // pred_check
        _
      $region10: #{vgcl_forward.2} parent=5 // pred_check_branch
        %181 = sbr.rel (%p178) target = $region12
      $region11: #{vgcl_forward.2} parent=5 // pred_region
        %s182 = ssub.s32 %s23, 1
        // Predicated region
        $region13: #{vgcl_forward.2} parent=11 // pred_check
          %p183 = pneg %p90
        $region14: #{vgcl_forward.2} parent=11 // pred_check_branch
          %185 = sbr.rel (%p183) target = $region16
        $region15: #{vgcl_forward.2} parent=11 // pred_region
          _
        $region16: #{vgcl_forward.2} parent=11 // pred_fallthru
          _
      $region12: #{vgcl_forward.2} parent=5 // pred_fallthru
        _
      %p186 = scmp.lt.s32.totalorder %s23, 9
      // Predicated region
      $region17: #{vgcl_forward.2} parent=5 // pred_check
        %p187 = pneg %p186
      $region18: #{vgcl_forward.2} parent=5 // pred_check_branch
        %189 = sbr.rel (%p187) target = $region20
      $region19: #{vgcl_forward.2} parent=5 // pred_region
        // Predicated region
        $region21: #{vgcl_forward.2} parent=19 // pred_check
          %p190 = pneg %p63
        $region22: #{vgcl_forward.2} parent=19 // pred_check_branch
          %192 = sbr.rel (%p190) target = $region24
        $region23: #{vgcl_forward.2} parent=19 // pred_region
          %s193 = sand.u32 %s53, 1
          %s194 = sand.u32 %s53, 1
          %s195 = smul.addr %s194, 64
          %s196 = scalar_lea.vmem [#allocation6], %s195
          %s197 = smul.u32 %s30, 3
          %s198 = sadd.s32 %s197, %s31
          %s199 = sld [smem:[#allocation4 + %s198]]
          %s200 = smul.u32 16, %s30
          %s201 = smul.addr %s200, 3
          %s202 = sadd.s32 %s199, %s201
          %s203 = smul.addr %s202, 4
          %s204 = scalar_lea.vmem %s2, %s203
          // Predicated region
          $region25: #{vgcl_forward.2} parent=23 // pred_check
            _
          $region26: #{vgcl_forward.2} parent=23 // pred_check_branch
            %206 = sbr.rel (0) target = $region28
          $region27: #{vgcl_forward.2} parent=23 // pred_region
            // Predicated region
            $region29: #{vgcl_forward.2} parent=27 // pred_check
              _
            $region30: #{vgcl_forward.2} parent=27 // pred_check_branch
              %208 = sbr.rel target = $region32
            $region31: #{vgcl_forward.2} parent=27 // pred_region
              // Predicated region
              $region44: #{vgcl_forward.2} parent=31 // pred_check
                _
              $region45: #{vgcl_forward.2} parent=31 // pred_check_branch
                %254 = sbr.rel (0) target = $region47
              $region46: #{vgcl_forward.2} parent=31 // pred_region
                loop: start=0, step=1, limit=1
                $region48: #{vgcl_forward.2} parent=46 // loop_pre_header
                  _
                $region49: #{vgcl_forward.2} parent=46 // loop_header
                  %s256 = sphi 0, %s260
                  %p257 = scmp.ge.s32.totalorder %s256, 1
                  %s261 = sphi %s204, %s204
                  %s262 = sphi %s196, %s196
                $region50: #{vgcl_forward.2} parent=46 // loop_header_branch
                  %259 = sbr.rel (%p257) target = $region54
                $region51: #{vgcl_forward.2} parent=46 // loop_body
                  _
                $region52: #{vgcl_forward.2} parent=46 // loop_footer
                  %s260 = sadd.s32 1, %s256
                $region53: #{vgcl_forward.2} parent=46 // loop_footer_branch
                  %255 = sbr.rel target = $region49
                $region54: #{vgcl_forward.2} parent=46 // loop_exit
                  _
                %s264 = ssub.s32 16, 1
                loop: start=0, step=1, limit=1
                $region55: #{vgcl_forward.2} parent=46 // loop_pre_header
                  _
                $region56: #{vgcl_forward.2} parent=46 // loop_header
                  %s266 = sphi 0, %s270
                  %p267 = scmp.ge.s32.totalorder %s266, 1
                  %s271 = sphi %s204, %s204
                  %s272 = sphi %s196, %s196
                $region57: #{vgcl_forward.2} parent=46 // loop_header_branch
                  %269 = sbr.rel (%p267) target = $region61
                $region58: #{vgcl_forward.2} parent=46 // loop_body
                  %v273 = vld [vmem:[%s271] sm:%s264]
                  %274 = vst [vmem:[%s272] sm:%s264] %v273
                  %v275 = vld [vmem:[%s271 + $0xc] sm:%s264]
                  %276 = vst [vmem:[%s272 + $0x4] sm:%s264] %v275
                  %v277 = vld [vmem:[%s271 + $0x18] sm:%s264]
                  %278 = vst [vmem:[%s272 + $0x8] sm:%s264] %v277
                  %v279 = vld [vmem:[%s271 + $0x24] sm:%s264]
                  %280 = vst [vmem:[%s272 + $0xc] sm:%s264] %v279
                  %v281 = vld [vmem:[%s271 + $0x30] sm:%s264]
                  %282 = vst [vmem:[%s272 + $0x10] sm:%s264] %v281
                  %v283 = vld [vmem:[%s271 + $0x3c] sm:%s264]
                  %284 = vst [vmem:[%s272 + $0x14] sm:%s264] %v283
                  %v285 = vld [vmem:[%s271 + $0x48] sm:%s264]
                  %286 = vst [vmem:[%s272 + $0x18] sm:%s264] %v285
                  %v287 = vld [vmem:[%s271 + $0x54] sm:%s264]
                  %288 = vst [vmem:[%s272 + $0x1c] sm:%s264] %v287
                  %v289 = vld [vmem:[%s271 + $0x60] sm:%s264]
                  %290 = vst [vmem:[%s272 + $0x20] sm:%s264] %v289
                  %v291 = vld [vmem:[%s271 + $0x6c] sm:%s264]
                  %292 = vst [vmem:[%s272 + $0x24] sm:%s264] %v291
                  %v293 = vld [vmem:[%s271 + $0x78] sm:%s264]
                  %294 = vst [vmem:[%s272 + $0x28] sm:%s264] %v293
                  %v295 = vld [vmem:[%s271 + $0x84] sm:%s264]
                  %296 = vst [vmem:[%s272 + $0x2c] sm:%s264] %v295
                  %v297 = vld [vmem:[%s271 + $0x90] sm:%s264]
                  %298 = vst [vmem:[%s272 + $0x30] sm:%s264] %v297
                  %v299 = vld [vmem:[%s271 + $0x9c] sm:%s264]
                  %300 = vst [vmem:[%s272 + $0x34] sm:%s264] %v299
                  %v301 = vld [vmem:[%s271 + $0xa8] sm:%s264]
                  %302 = vst [vmem:[%s272 + $0x38] sm:%s264] %v301
                  %v303 = vld [vmem:[%s271 + $0xb4] sm:%s264]
                  %304 = vst [vmem:[%s272 + $0x3c] sm:%s264] %v303
                $region59: #{vgcl_forward.2} parent=46 // loop_footer
                  %s270 = sadd.s32 1, %s266
                $region60: #{vgcl_forward.2} parent=46 // loop_footer_branch
                  %265 = sbr.rel target = $region56
                $region61: #{vgcl_forward.2} parent=46 // loop_exit
                  _
              $region47: #{vgcl_forward.2} parent=31 // pred_fallthru
                _
            $region32: #{vgcl_forward.2} parent=27 // pred_fallthru
              _
            // Predicated region
            $region33: #{vgcl_forward.2} parent=27 // pred_check
              _
            $region34: #{vgcl_forward.2} parent=27 // pred_check_branch
              %210 = sbr.rel (0) target = $region36
            $region35: #{vgcl_forward.2} parent=27 // pred_region
              %s212 = ssub.s32 16, 1
              loop: start=0, step=1, limit=1
              $region37: #{vgcl_forward.2} parent=35 // loop_pre_header
                _
              $region38: #{vgcl_forward.2} parent=35 // loop_header
                %s214 = sphi 0, %s218
                %p215 = scmp.ge.s32.totalorder %s214, 1
                %s219 = sphi %s204, %s204
                %s220 = sphi %s196, %s196
              $region39: #{vgcl_forward.2} parent=35 // loop_header_branch
                %217 = sbr.rel (%p215) target = $region43
              $region40: #{vgcl_forward.2} parent=35 // loop_body
                %v221 = vld [vmem:[%s219] sm:%s212]
                %222 = vst [vmem:[%s220] sm:%s212] %v221
                %v223 = vld [vmem:[%s219 + $0xc] sm:%s212]
                %224 = vst [vmem:[%s220 + $0x4] sm:%s212] %v223
                %v225 = vld [vmem:[%s219 + $0x18] sm:%s212]
                %226 = vst [vmem:[%s220 + $0x8] sm:%s212] %v225
                %v227 = vld [vmem:[%s219 + $0x24] sm:%s212]
                %228 = vst [vmem:[%s220 + $0xc] sm:%s212] %v227
                %v229 = vld [vmem:[%s219 + $0x30] sm:%s212]
                %230 = vst [vmem:[%s220 + $0x10] sm:%s212] %v229
                %v231 = vld [vmem:[%s219 + $0x3c] sm:%s212]
                %232 = vst [vmem:[%s220 + $0x14] sm:%s212] %v231
                %v233 = vld [vmem:[%s219 + $0x48] sm:%s212]
                %234 = vst [vmem:[%s220 + $0x18] sm:%s212] %v233
                %v235 = vld [vmem:[%s219 + $0x54] sm:%s212]
                %236 = vst [vmem:[%s220 + $0x1c] sm:%s212] %v235
                %v237 = vld [vmem:[%s219 + $0x60] sm:%s212]
                %238 = vst [vmem:[%s220 + $0x20] sm:%s212] %v237
                %v239 = vld [vmem:[%s219 + $0x6c] sm:%s212]
                %240 = vst [vmem:[%s220 + $0x24] sm:%s212] %v239
                %v241 = vld [vmem:[%s219 + $0x78] sm:%s212]
                %242 = vst [vmem:[%s220 + $0x28] sm:%s212] %v241
                %v243 = vld [vmem:[%s219 + $0x84] sm:%s212]
                %244 = vst [vmem:[%s220 + $0x2c] sm:%s212] %v243
                %v245 = vld [vmem:[%s219 + $0x90] sm:%s212]
                %246 = vst [vmem:[%s220 + $0x30] sm:%s212] %v245
                %v247 = vld [vmem:[%s219 + $0x9c] sm:%s212]
                %248 = vst [vmem:[%s220 + $0x34] sm:%s212] %v247
                %v249 = vld [vmem:[%s219 + $0xa8] sm:%s212]
                %250 = vst [vmem:[%s220 + $0x38] sm:%s212] %v249
                %v251 = vld [vmem:[%s219 + $0xb4] sm:%s212]
                %252 = vst [vmem:[%s220 + $0x3c] sm:%s212] %v251
              $region41: #{vgcl_forward.2} parent=35 // loop_footer
                %s218 = sadd.s32 1, %s214
              $region42: #{vgcl_forward.2} parent=35 // loop_footer_branch
                %213 = sbr.rel target = $region38
              $region43: #{vgcl_forward.2} parent=35 // loop_exit
                _
            $region36: #{vgcl_forward.2} parent=27 // pred_fallthru
              _
          $region28: #{vgcl_forward.2} parent=23 // pred_fallthru
            _
          %305 = vnop
        $region24: #{vgcl_forward.2} parent=19 // pred_fallthru
          _
        // Predicated region
        $region62: #{vgcl_forward.2} parent=19 // pred_check
          %p306 = pneg %p110
        $region63: #{vgcl_forward.2} parent=19 // pred_check_branch
          %308 = sbr.rel (%p306) target = $region65
        $region64: #{vgcl_forward.2} parent=19 // pred_region
          %s309 = smul.u32 16, %s30
          %p310 = scmp.lt.s32.totalorder %s309, 47
          %s311 = scalar_select %p310, %s309, 47
          %s312 = smul.addr %s311, 8
          %s313 = scalar_lea.vmem %s4, %s312
          %s314 = smul.u32 16, %s30
        $region65: #{vgcl_forward.2} parent=19 // pred_fallthru
          _
      $region20: #{vgcl_forward.2} parent=5 // pred_fallthru
        _
      %p315 = scmp.le.s32.totalorder 1, %s23
      %p316 = scmp.lt.s32.totalorder %s23, 10
      %p317 = pnand %p315, %p316
      %p318 = pneg %p317
      // Predicated region
      $region66: #{vgcl_forward.2} parent=5 // pred_check
        _
      $region67: #{vgcl_forward.2} parent=5 // pred_check_branch
        %320 = sbr.rel (%p317) target = $region69
      $region68: #{vgcl_forward.2} parent=5 // pred_region
        %s321 = ssub.s32 %s23, 1
        %s322 = sand.u32 %s56, 1
        %s323 = sand.u32 %s56, 1
        %s324 = smul.addr %s323, 64
        %s325 = scalar_lea.vmem [#allocation6], %s324
        // Predicated region
        $region70: #{vgcl_forward.2} parent=68 // pred_check
          %p326 = pneg %p69
        $region71: #{vgcl_forward.2} parent=68 // pred_check_branch
          %328 = sbr.rel (%p326) target = $region73
        $region72: #{vgcl_forward.2} parent=68 // pred_region
          _
        $region73: #{vgcl_forward.2} parent=68 // pred_fallthru
          _
        %s329 = sand.u32 %s56, 1
        %s330 = sand.u32 %s56, 1
        %s331 = smul.addr %s330, 64
        %s332 = scalar_lea.vmem [#allocation6], %s331
        %p333 = pneg %p69
        %p334 = pneg %p66
        %p335 = pneg %p90
        %p336 = pneg %p87
        %s337 = smul.u32 16, %s32
        %p338 = scmp.lt.s32.totalorder %s337, 47
        %s339 = scalar_select %p338, %s337, 47
        %s340 = smul.addr %s339, 8
        %s341 = scalar_lea.vmem %s4, %s340
        %p342 = pneg %p116
        %p343 = pneg %p113
        %p344 = pneg %p142
        %p345 = pneg %p139
        %s346 = smul.u32 16, %s32
        %p347 = scmp.lt.s32.totalorder %s346, 47
        %s348 = scalar_select %p347, %s346, 47
        %s349 = smul.addr %s348, 4
        %s350 = scalar_lea.vmem %s5, %s349
        %p351 = pneg %p168
        %p352 = pneg %p165
        %s353 = smul.u32 16, %s32
        %p354 = scmp.lt.s32.totalorder %s353, 47
        %s355 = scalar_select %p354, %s353, 47
        %s356 = smul.addr %s355, 8
        %s357 = scalar_lea.vmem %s6, %s356
        %s358 = smul.u32 %s32, 3
        %s359 = sadd.s32 %s358, %s33
        %s360 = sld [smem:[#allocation4 + %s359]]
        %s361 = smul.u32 16, %s32
        %s362 = smul.u32 16, %s32
        %p363 = scmp.lt.s32.totalorder %s362, 47
        %s364 = scalar_select %p363, %s362, 47
        %s365 = smul.addr %s364, 8
        %s366 = scalar_lea.vmem %s4, %s365
        %s367 = smul.u32 16, %s32
        %s368 = smul.u32 16, %s32
        %p369 = scmp.lt.s32.totalorder %s368, 47
        %s370 = scalar_select %p369, %s368, 47
        %s371 = smul.addr %s370, 4
        %s372 = scalar_lea.vmem %s5, %s371
        %s373 = smul.u32 16, %s32
        %s374 = smul.u32 16, %s32
        %p375 = scmp.lt.s32.totalorder %s374, 47
        %s376 = scalar_select %p375, %s374, 47
        %s377 = smul.addr %s376, 8
        %s378 = scalar_lea.vmem %s6, %s377
        %s379 = smul.u32 16, %s32
        %p381 = scmp.eq.s32.totalorder %s33, 0
        // Predicated region
        $region74: #{vgcl_forward.2} parent=68 // pred_check
          %p382 = pneg %p381
        $region75: #{vgcl_forward.2} parent=68 // pred_check_branch
          %384 = sbr.rel (%p382) target = $region77
        $region76: #{vgcl_forward.2} parent=68 // pred_region
          %385 = vst [vmem:[#allocation2] sm:$0xff] 0.0
          %386 = vst [vmem:[#allocation2 + $0x8] sm:$0xff] 0.0
          %387 = vst [vmem:[#allocation2 + $0x10] sm:$0xff] 0.0
          %388 = vst [vmem:[#allocation2 + $0x18] sm:$0xff] 0.0
          %389 = vst [vmem:[#allocation2 + $0x20] sm:$0xff] 0.0
          %390 = vst [vmem:[#allocation2 + $0x28] sm:$0xff] 0.0
          %391 = vst [vmem:[#allocation2 + $0x30] sm:$0xff] 0.0
          %392 = vst [vmem:[#allocation2 + $0x38] sm:$0xff] 0.0
          %393 = vst [vmem:[#allocation2 + $0x40] sm:$0xff] 0.0
          %394 = vst [vmem:[#allocation2 + $0x48] sm:$0xff] 0.0
          %395 = vst [vmem:[#allocation2 + $0x50] sm:$0xff] 0.0
          %396 = vst [vmem:[#allocation2 + $0x58] sm:$0xff] 0.0
          %397 = vst [vmem:[#allocation2 + $0x60] sm:$0xff] 0.0
          %398 = vst [vmem:[#allocation2 + $0x68] sm:$0xff] 0.0
          %399 = vst [vmem:[#allocation2 + $0x70] sm:$0xff] 0.0
          %400 = vst [vmem:[#allocation2 + $0x78] sm:$0xff] 0.0
        $region77: #{vgcl_forward.2} parent=68 // pred_fallthru
          _
        %s401 = sld [smem:[#allocation5 + %s32]]
        %p402 = scmp.lt.s32.totalorder %s33, %s401
        // Predicated region
        $region78: #{vgcl_forward.2} parent=68 // pred_check
          %p403 = pneg %p402
        $region79: #{vgcl_forward.2} parent=68 // pred_check_branch
          %405 = sbr.rel (%p403) target = $region81
        $region80: #{vgcl_forward.2} parent=68 // pred_region
          %s406 = smul.u32 %s32, 3
          %s407 = sadd.s32 %s406, %s33
          %s408 = sld [smem:[#allocation4 + %s407]]
          %s409 = smul.u32 %s408, 128
          %s410 = sshra.s32 %s409, 3
          %s411 = sand.u32 %s409, 7
          %s412 = smul.addr %s410, 4
          %s413 = scalar_lea.vmem %s3, %s412
          %v414 = vld [vmem:[%s413] sm:$0xf]
          %v415 = vld [vmem:[%s413 + $0x4] sm:$0xf]
          %v416 = vld [vmem:[%s413 + $0x8] sm:$0xf]
          %v417 = vld [vmem:[%s413 + $0xc] sm:$0xf]
          %v418 = vld [vmem:[%s413 + $0x10] sm:$0xf]
          %v419 = vld [vmem:[%s413 + $0x14] sm:$0xf]
          %v420 = vld [vmem:[%s413 + $0x18] sm:$0xf]
          %v421 = vld [vmem:[%s413 + $0x1c] sm:$0xf]
          %v422 = vld [vmem:[%s413 + $0x20] sm:$0xf]
          %v423 = vld [vmem:[%s413 + $0x24] sm:$0xf]
          %v424 = vld [vmem:[%s413 + $0x28] sm:$0xf]
          %v425 = vld [vmem:[%s413 + $0x2c] sm:$0xf]
          %v426 = vld [vmem:[%s413 + $0x30] sm:$0xf]
          %v427 = vld [vmem:[%s413 + $0x34] sm:$0xf]
          %v428 = vld [vmem:[%s413 + $0x38] sm:$0xf]
          %v429 = vld [vmem:[%s413 + $0x3c] sm:$0xf]
          %v430 = vld [vmem:[#allocation2] sm:$0xff]
          %v431 = vld [vmem:[#allocation2 + $0x8] sm:$0xff]
          %v432 = vld [vmem:[#allocation2 + $0x10] sm:$0xff]
          %v433 = vld [vmem:[#allocation2 + $0x18] sm:$0xff]
          %v434 = vld [vmem:[#allocation2 + $0x20] sm:$0xff]
          %v435 = vld [vmem:[#allocation2 + $0x28] sm:$0xff]
          %v436 = vld [vmem:[#allocation2 + $0x30] sm:$0xff]
          %v437 = vld [vmem:[#allocation2 + $0x38] sm:$0xff]
          %v438 = vld [vmem:[#allocation2 + $0x40] sm:$0xff]
          %v439 = vld [vmem:[#allocation2 + $0x48] sm:$0xff]
          %v440 = vld [vmem:[#allocation2 + $0x50] sm:$0xff]
          %v441 = vld [vmem:[#allocation2 + $0x58] sm:$0xff]
          %v442 = vld [vmem:[#allocation2 + $0x60] sm:$0xff]
          %v443 = vld [vmem:[#allocation2 + $0x68] sm:$0xff]
          %v444 = vld [vmem:[#allocation2 + $0x70] sm:$0xff]
          %v445 = vld [vmem:[#allocation2 + $0x78] sm:$0xff]
          %v446 = vld [vmem:[%s325] sm:$0xf]
          %v447 = vld [vmem:[%s325 + $0x4] sm:$0xf]
          %v448 = vld [vmem:[%s325 + $0x8] sm:$0xf]
          %v449 = vld [vmem:[%s325 + $0xc] sm:$0xf]
          %v450 = vld [vmem:[%s325 + $0x10] sm:$0xf]
          %v451 = vld [vmem:[%s325 + $0x14] sm:$0xf]
          %v452 = vld [vmem:[%s325 + $0x18] sm:$0xf]
          %v453 = vld [vmem:[%s325 + $0x1c] sm:$0xf]
          %v454 = vld [vmem:[%s325 + $0x20] sm:$0xf]
          %v455 = vld [vmem:[%s325 + $0x24] sm:$0xf]
          %v456 = vld [vmem:[%s325 + $0x28] sm:$0xf]
          %v457 = vld [vmem:[%s325 + $0x2c] sm:$0xf]
          %v458 = vld [vmem:[%s325 + $0x30] sm:$0xf]
          %v459 = vld [vmem:[%s325 + $0x34] sm:$0xf]
          %v460 = vld [vmem:[%s325 + $0x38] sm:$0xf]
          %v461 = vld [vmem:[%s325 + $0x3c] sm:$0xf]
          %v478 = vunpack.c.l.b16 %v446
          %v479 = vunpack.c.l.b16 %v447
          %v480 = vunpack.c.l.b16 %v448
          %v481 = vunpack.c.l.b16 %v449
          %v482 = vunpack.c.l.b16 %v450
          %v483 = vunpack.c.l.b16 %v451
          %v484 = vunpack.c.l.b16 %v452
          %v485 = vunpack.c.l.b16 %v453
          %v486 = vunpack.c.l.b16 %v454
          %v487 = vunpack.c.l.b16 %v455
          %v488 = vunpack.c.l.b16 %v456
          %v489 = vunpack.c.l.b16 %v457
          %v490 = vunpack.c.l.b16 %v458
          %v491 = vunpack.c.l.b16 %v459
          %v492 = vunpack.c.l.b16 %v460
          %v493 = vunpack.c.l.b16 %v461
          %v494 = vpack.c.b16 %v479, %v478
          %v495 = vpack.c.b16 %v481, %v480
          %v496 = vpack.c.b16 %v483, %v482
          %v497 = vpack.c.b16 %v485, %v484
          %v498 = vpack.c.b16 %v487, %v486
          %v499 = vpack.c.b16 %v489, %v488
          %v500 = vpack.c.b16 %v491, %v490
          %v501 = vpack.c.b16 %v493, %v492
          %v526 = vunpack.c.l.b16 %v414
          %v527 = vunpack.c.l.b16 %v415
          %v528 = vunpack.c.l.b16 %v416
          %v529 = vunpack.c.l.b16 %v417
          %v530 = vunpack.c.l.b16 %v418
          %v531 = vunpack.c.l.b16 %v419
          %v532 = vunpack.c.l.b16 %v420
          %v533 = vunpack.c.l.b16 %v421
          %v534 = vunpack.c.l.b16 %v422
          %v535 = vunpack.c.l.b16 %v423
          %v536 = vunpack.c.l.b16 %v424
          %v537 = vunpack.c.l.b16 %v425
          %v538 = vunpack.c.l.b16 %v426
          %v539 = vunpack.c.l.b16 %v427
          %v540 = vunpack.c.l.b16 %v428
          %v541 = vunpack.c.l.b16 %v429
          %v542 = vpack.c.b16 %v527, %v526
          %v543 = vpack.c.b16 %v529, %v528
          %v544 = vpack.c.b16 %v531, %v530
          %v545 = vpack.c.b16 %v533, %v532
          %v546 = vpack.c.b16 %v535, %v534
          %v547 = vpack.c.b16 %v537, %v536
          %v548 = vpack.c.b16 %v539, %v538
          %v549 = vpack.c.b16 %v541, %v540
          %558 = vmatprep.subr.bf16.mxu0 0
          %559 = vmatpush1.bf16.msra.mxu0 %v549
          %560 = vmatprep.subr.bf16.mxu0 0
          %561 = vmatpush1.bf16.msra.mxu0 %v548
          %562 = vmatprep.subr.bf16.mxu0 0
          %563 = vmatpush1.bf16.msra.mxu0 %v547
          %564 = vmatprep.subr.bf16.mxu0 0
          %565 = vmatpush1.bf16.msra.mxu0 %v546
          %566 = vmatprep.subr.bf16.mxu0 0
          %567 = vmatpush1.bf16.msra.mxu0 %v545
          %568 = vmatprep.subr.bf16.mxu0 0
          %569 = vmatpush1.bf16.msra.mxu0 %v544
          %570 = vmatprep.subr.bf16.mxu0 0
          %571 = vmatpush1.bf16.msra.mxu0 %v543
          %572 = vmatprep.subr.bf16.mxu0 0
          %573 = vmatpush1.bf16.msra.mxu0 %v542
          %574 = vmatprep.subr.bf16.mxu0 0
          %575 = vmatpush2.bf16.msra.mxu0 0
          %576 = vmatprep.subr.bf16.mxu0 0
          %577 = vmatpush2.bf16.msra.mxu0 0
          %578 = vmatprep.subr.bf16.mxu0 0
          %579 = vmatpush2.bf16.msra.mxu0 0
          %580 = vmatprep.subr.bf16.mxu0 0
          %581 = vmatpush2.bf16.msra.mxu0 0
          %582 = vmatprep.subr.bf16.mxu0 0
          %583 = vmatpush2.bf16.msra.mxu0 0
          %584 = vmatprep.subr.bf16.mxu0 0
          %585 = vmatpush2.bf16.msra.mxu0 0
          %586 = vmatprep.subr.bf16.mxu0 0
          %587 = vmatpush2.bf16.msra.mxu0 0
          %588 = vmatprep.subr.bf16.mxu0 0
          %589 = vmatpush2.bf16.msra.mxu0 0
          %590 = vmatprep.mubr.bf16.mxu0 0
          %591 = vmatmul.mubr.bf16.gmra.mxu0 %v494
          %v592 = vpop.f32.mrf.mxu0
          %v593 = vadd.f32 0.0, %v592
          %v594 = vpop.f32.mrf.mxu0
          %v595 = vpop.f32.mrf.mxu0
          %v596 = vadd.f32 0.0, %v595
          %v597 = vpop.f32.mrf.mxu0
          %598 = vmatprep.mubr.bf16.mxu0 0
          %599 = vmatmul.mubr.bf16.gmra.mxu0 %v495
          %v600 = vpop.f32.mrf.mxu0
          %v601 = vadd.f32 0.0, %v600
          %v602 = vpop.f32.mrf.mxu0
          %v603 = vpop.f32.mrf.mxu0
          %v604 = vadd.f32 0.0, %v603
          %v605 = vpop.f32.mrf.mxu0
          %606 = vmatprep.mubr.bf16.mxu0 0
          %607 = vmatmul.mubr.bf16.gmra.mxu0 %v496
          %v608 = vpop.f32.mrf.mxu0
          %v609 = vadd.f32 0.0, %v608
          %v610 = vpop.f32.mrf.mxu0
          %v611 = vpop.f32.mrf.mxu0
          %v612 = vadd.f32 0.0, %v611
          %v613 = vpop.f32.mrf.mxu0
          %614 = vmatprep.mubr.bf16.mxu0 0
          %615 = vmatmul.mubr.bf16.gmra.mxu0 %v497
          %v616 = vpop.f32.mrf.mxu0
          %v617 = vadd.f32 0.0, %v616
          %v618 = vpop.f32.mrf.mxu0
          %v619 = vpop.f32.mrf.mxu0
          %v620 = vadd.f32 0.0, %v619
          %v621 = vpop.f32.mrf.mxu0
          %622 = vmatprep.mubr.bf16.mxu0 0
          %623 = vmatmul.mubr.bf16.gmra.mxu0 %v498
          %v624 = vpop.f32.mrf.mxu0
          %v625 = vadd.f32 0.0, %v624
          %v626 = vpop.f32.mrf.mxu0
          %v627 = vpop.f32.mrf.mxu0
          %v628 = vadd.f32 0.0, %v627
          %v629 = vpop.f32.mrf.mxu0
          %630 = vmatprep.mubr.bf16.mxu0 0
          %631 = vmatmul.mubr.bf16.gmra.mxu0 %v499
          %v632 = vpop.f32.mrf.mxu0
          %v633 = vadd.f32 0.0, %v632
          %v634 = vpop.f32.mrf.mxu0
          %v635 = vpop.f32.mrf.mxu0
          %v636 = vadd.f32 0.0, %v635
          %v637 = vpop.f32.mrf.mxu0
          %638 = vmatprep.mubr.bf16.mxu0 0
          %639 = vmatmul.mubr.bf16.gmra.mxu0 %v500
          %v640 = vpop.f32.mrf.mxu0
          %v641 = vadd.f32 0.0, %v640
          %v642 = vpop.f32.mrf.mxu0
          %v643 = vpop.f32.mrf.mxu0
          %v644 = vadd.f32 0.0, %v643
          %v645 = vpop.f32.mrf.mxu0
          %646 = vmatprep.mubr.bf16.mxu0 0
          %647 = vmatmul.mubr.bf16.gmra.mxu0 %v501
          %v648 = vpop.f32.mrf.mxu0
          %v649 = vadd.f32 0.0, %v648
          %v650 = vpop.f32.mrf.mxu0
          %v651 = vpop.f32.mrf.mxu0
          %v652 = vadd.f32 0.0, %v651
          %v653 = vpop.f32.mrf.mxu0
          %654 = vdwg.mxu0
          %v655 = vadd.f32 %v430, %v593
          %v656 = vadd.f32 %v431, %v596
          %v657 = vadd.f32 %v432, %v601
          %v658 = vadd.f32 %v433, %v604
          %v659 = vadd.f32 %v434, %v609
          %v660 = vadd.f32 %v435, %v612
          %v661 = vadd.f32 %v436, %v617
          %v662 = vadd.f32 %v437, %v620
          %v663 = vadd.f32 %v438, %v625
          %v664 = vadd.f32 %v439, %v628
          %v665 = vadd.f32 %v440, %v633
          %v666 = vadd.f32 %v441, %v636
          %v667 = vadd.f32 %v442, %v641
          %v668 = vadd.f32 %v443, %v644
          %v669 = vadd.f32 %v444, %v649
          %v670 = vadd.f32 %v445, %v652
          %671 = vst [vmem:[#allocation2] sm:$0xff] %v655
          %672 = vst [vmem:[#allocation2 + $0x8] sm:$0xff] %v656
          %673 = vst [vmem:[#allocation2 + $0x10] sm:$0xff] %v657
          %674 = vst [vmem:[#allocation2 + $0x18] sm:$0xff] %v658
          %675 = vst [vmem:[#allocation2 + $0x20] sm:$0xff] %v659
          %676 = vst [vmem:[#allocation2 + $0x28] sm:$0xff] %v660
          %677 = vst [vmem:[#allocation2 + $0x30] sm:$0xff] %v661
          %678 = vst [vmem:[#allocation2 + $0x38] sm:$0xff] %v662
          %679 = vst [vmem:[#allocation2 + $0x40] sm:$0xff] %v663
          %680 = vst [vmem:[#allocation2 + $0x48] sm:$0xff] %v664
          %681 = vst [vmem:[#allocation2 + $0x50] sm:$0xff] %v665
          %682 = vst [vmem:[#allocation2 + $0x58] sm:$0xff] %v666
          %683 = vst [vmem:[#allocation2 + $0x60] sm:$0xff] %v667
          %684 = vst [vmem:[#allocation2 + $0x68] sm:$0xff] %v668
          %685 = vst [vmem:[#allocation2 + $0x70] sm:$0xff] %v669
          %686 = vst [vmem:[#allocation2 + $0x78] sm:$0xff] %v670
        $region81: #{vgcl_forward.2} parent=68 // pred_fallthru
          _
        %p687 = scmp.eq.s32.totalorder %s33, 2
        // Predicated region
        $region82: #{vgcl_forward.2} parent=68 // pred_check
          %p688 = pneg %p687
        $region83: #{vgcl_forward.2} parent=68 // pred_check_branch
          %690 = sbr.rel (%p688) target = $region85
        $region84: #{vgcl_forward.2} parent=68 // pred_region
          %v691 = vld [vmem:[#allocation2] sm:$0xff]
          %v692 = vld [vmem:[#allocation2 + $0x8] sm:$0xff]
          %v693 = vld [vmem:[#allocation2 + $0x10] sm:$0xff]
          %v694 = vld [vmem:[#allocation2 + $0x18] sm:$0xff]
          %v695 = vld [vmem:[#allocation2 + $0x20] sm:$0xff]
          %v696 = vld [vmem:[#allocation2 + $0x28] sm:$0xff]
          %v697 = vld [vmem:[#allocation2 + $0x30] sm:$0xff]
          %v698 = vld [vmem:[#allocation2 + $0x38] sm:$0xff]
          %v699 = vld [vmem:[#allocation2 + $0x40] sm:$0xff]
          %v700 = vld [vmem:[#allocation2 + $0x48] sm:$0xff]
          %v701 = vld [vmem:[#allocation2 + $0x50] sm:$0xff]
          %v702 = vld [vmem:[#allocation2 + $0x58] sm:$0xff]
          %v703 = vld [vmem:[#allocation2 + $0x60] sm:$0xff]
          %v704 = vld [vmem:[#allocation2 + $0x68] sm:$0xff]
          %v705 = vld [vmem:[#allocation2 + $0x70] sm:$0xff]
          %v706 = vld [vmem:[#allocation2 + $0x78] sm:$0xff]
          %v707 = vpack.c.bf16 %v692, %v691
          %v708 = vpack.c.bf16 %v694, %v693
          %v709 = vpack.c.bf16 %v696, %v695
          %v710 = vpack.c.bf16 %v698, %v697
          %v711 = vpack.c.bf16 %v700, %v699
          %v712 = vpack.c.bf16 %v702, %v701
          %v713 = vpack.c.bf16 %v704, %v703
          %v714 = vpack.c.bf16 %v706, %v705
          %v723 = vunpack.c.l.b16 %v707
          %v724 = vunpack.c.h.b16 %v707
          %v725 = vunpack.c.l.b16 %v708
          %v726 = vunpack.c.h.b16 %v708
          %v727 = vunpack.c.l.b16 %v709
          %v728 = vunpack.c.h.b16 %v709
          %v729 = vunpack.c.l.b16 %v710
          %v730 = vunpack.c.h.b16 %v710
          %v731 = vunpack.c.l.b16 %v711
          %v732 = vunpack.c.h.b16 %v711
          %v733 = vunpack.c.l.b16 %v712
          %v734 = vunpack.c.h.b16 %v712
          %v735 = vunpack.c.l.b16 %v713
          %v736 = vunpack.c.h.b16 %v713
          %v737 = vunpack.c.l.b16 %v714
          %v738 = vunpack.c.h.b16 %v714
          %v739 = vpack.c.b16 %v723, %v723
          %v740 = vpack.c.b16 %v724, %v724
          %v741 = vpack.c.b16 %v725, %v725
          %v742 = vpack.c.b16 %v726, %v726
          %v743 = vpack.c.b16 %v727, %v727
          %v744 = vpack.c.b16 %v728, %v728
          %v745 = vpack.c.b16 %v729, %v729
          %v746 = vpack.c.b16 %v730, %v730
          %v747 = vpack.c.b16 %v731, %v731
          %v748 = vpack.c.b16 %v732, %v732
          %v749 = vpack.c.b16 %v733, %v733
          %v750 = vpack.c.b16 %v734, %v734
          %v751 = vpack.c.b16 %v735, %v735
          %v752 = vpack.c.b16 %v736, %v736
          %v753 = vpack.c.b16 %v737, %v737
          %v754 = vpack.c.b16 %v738, %v738
          %771 = vst [vmem:[%s372] sm:$0xf] %v739
          %772 = vst [vmem:[%s372 + $0x4] sm:$0xf] %v740
          %773 = vst [vmem:[%s372 + $0x8] sm:$0xf] %v741
          %774 = vst [vmem:[%s372 + $0xc] sm:$0xf] %v742
          %775 = vst [vmem:[%s372 + $0x10] sm:$0xf] %v743
          %776 = vst [vmem:[%s372 + $0x14] sm:$0xf] %v744
          %777 = vst [vmem:[%s372 + $0x18] sm:$0xf] %v745
          %778 = vst [vmem:[%s372 + $0x1c] sm:$0xf] %v746
          %779 = vst [vmem:[%s372 + $0x20] sm:$0xf] %v747
          %780 = vst [vmem:[%s372 + $0x24] sm:$0xf] %v748
          %781 = vst [vmem:[%s372 + $0x28] sm:$0xf] %v749
          %782 = vst [vmem:[%s372 + $0x2c] sm:$0xf] %v750
          %783 = vst [vmem:[%s372 + $0x30] sm:$0xf] %v751
          %784 = vst [vmem:[%s372 + $0x34] sm:$0xf] %v752
          %785 = vst [vmem:[%s372 + $0x38] sm:$0xf] %v753
          %786 = vst [vmem:[%s372 + $0x3c] sm:$0xf] %v754
          %v787 = vld [vmem:[%s366] sm:$0xff]
          %v788 = vld [vmem:[%s366 + $0x8] sm:$0xff]
          %v789 = vld [vmem:[%s366 + $0x10] sm:$0xff]
          %v790 = vld [vmem:[%s366 + $0x18] sm:$0xff]
          %v791 = vld [vmem:[%s366 + $0x20] sm:$0xff]
          %v792 = vld [vmem:[%s366 + $0x28] sm:$0xff]
          %v793 = vld [vmem:[%s366 + $0x30] sm:$0xff]
          %v794 = vld [vmem:[%s366 + $0x38] sm:$0xff]
          %v795 = vld [vmem:[%s366 + $0x40] sm:$0xff]
          %v796 = vld [vmem:[%s366 + $0x48] sm:$0xff]
          %v797 = vld [vmem:[%s366 + $0x50] sm:$0xff]
          %v798 = vld [vmem:[%s366 + $0x58] sm:$0xff]
          %v799 = vld [vmem:[%s366 + $0x60] sm:$0xff]
          %v800 = vld [vmem:[%s366 + $0x68] sm:$0xff]
          %v801 = vld [vmem:[%s366 + $0x70] sm:$0xff]
          %v802 = vld [vmem:[%s366 + $0x78] sm:$0xff]
          %v803 = vadd.f32 %v787, %v691
          %v804 = vadd.f32 %v788, %v692
          %v805 = vadd.f32 %v789, %v693
          %v806 = vadd.f32 %v790, %v694
          %v807 = vadd.f32 %v791, %v695
          %v808 = vadd.f32 %v792, %v696
          %v809 = vadd.f32 %v793, %v697
          %v810 = vadd.f32 %v794, %v698
          %v811 = vadd.f32 %v795, %v699
          %v812 = vadd.f32 %v796, %v700
          %v813 = vadd.f32 %v797, %v701
          %v814 = vadd.f32 %v798, %v702
          %v815 = vadd.f32 %v799, %v703
          %v816 = vadd.f32 %v800, %v704
          %v817 = vadd.f32 %v801, %v705
          %v818 = vadd.f32 %v802, %v706
          %819 = vst [vmem:[%s378] sm:$0xff] %v803
          %820 = vst [vmem:[%s378 + $0x8] sm:$0xff] %v804
          %821 = vst [vmem:[%s378 + $0x10] sm:$0xff] %v805
          %822 = vst [vmem:[%s378 + $0x18] sm:$0xff] %v806
          %823 = vst [vmem:[%s378 + $0x20] sm:$0xff] %v807
          %824 = vst [vmem:[%s378 + $0x28] sm:$0xff] %v808
          %825 = vst [vmem:[%s378 + $0x30] sm:$0xff] %v809
          %826 = vst [vmem:[%s378 + $0x38] sm:$0xff] %v810
          %827 = vst [vmem:[%s378 + $0x40] sm:$0xff] %v811
          %828 = vst [vmem:[%s378 + $0x48] sm:$0xff] %v812
          %829 = vst [vmem:[%s378 + $0x50] sm:$0xff] %v813
          %830 = vst [vmem:[%s378 + $0x58] sm:$0xff] %v814
          %831 = vst [vmem:[%s378 + $0x60] sm:$0xff] %v815
          %832 = vst [vmem:[%s378 + $0x68] sm:$0xff] %v816
          %833 = vst [vmem:[%s378 + $0x70] sm:$0xff] %v817
          %834 = vst [vmem:[%s378 + $0x78] sm:$0xff] %v818
        $region85: #{vgcl_forward.2} parent=68 // pred_fallthru
          _
        %s835 = smul.u32 16, %s32
        %p836 = scmp.lt.s32.totalorder %s835, 47
        %s837 = scalar_select %p836, %s835, 47
        %s838 = smul.addr %s837, 4
        %s839 = scalar_lea.vmem %s5, %s838
        %s840 = smul.u32 16, %s32
        %p841 = scmp.lt.s32.totalorder %s840, 47
        %s842 = scalar_select %p841, %s840, 47
        %s843 = smul.addr %s842, 8
        %s844 = scalar_lea.vmem %s6, %s843
        // Predicated region
        $region86: #{vgcl_forward.2} parent=68 // pred_check
          %p845 = pneg %p139
        $region87: #{vgcl_forward.2} parent=68 // pred_check_branch
          %847 = sbr.rel (%p845) target = $region89
        $region88: #{vgcl_forward.2} parent=68 // pred_region
          %s848 = smul.u32 16, %s32
        $region89: #{vgcl_forward.2} parent=68 // pred_fallthru
          _
        // Predicated region
        $region90: #{vgcl_forward.2} parent=68 // pred_check
          %p849 = pneg %p165
        $region91: #{vgcl_forward.2} parent=68 // pred_check_branch
          %851 = sbr.rel (%p849) target = $region93
        $region92: #{vgcl_forward.2} parent=68 // pred_region
          %s852 = smul.u32 16, %s32
        $region93: #{vgcl_forward.2} parent=68 // pred_fallthru
          _
      $region69: #{vgcl_forward.2} parent=5 // pred_fallthru
        _
      %p853 = scmp.le.s32.totalorder 2, %s23
      // Predicated region
      $region94: #{vgcl_forward.2} parent=5 // pred_check
        %p854 = pneg %p853
      $region95: #{vgcl_forward.2} parent=5 // pred_check_branch
        %856 = sbr.rel (%p854) target = $region97
      $region96: #{vgcl_forward.2} parent=5 // pred_region
        %s857 = ssub.s32 %s23, 2
        // Predicated region
        $region98: #{vgcl_forward.2} parent=96 // pred_check
          %p858 = pneg %p145
        $region99: #{vgcl_forward.2} parent=96 // pred_check_branch
          %860 = sbr.rel (%p858) target = $region101
        $region100: #{vgcl_forward.2} parent=96 // pred_region
          %s861 = smul.u32 16, %s34
          %p862 = scmp.lt.s32.totalorder %s861, 47
          %s863 = scalar_select %p862, %s861, 47
          %s864 = smul.addr %s863, 4
          %s865 = scalar_lea.vmem %s5, %s864
        $region101: #{vgcl_forward.2} parent=96 // pred_fallthru
          _
        // Predicated region
        $region102: #{vgcl_forward.2} parent=96 // pred_check
          %p866 = pneg %p171
        $region103: #{vgcl_forward.2} parent=96 // pred_check_branch
          %868 = sbr.rel (%p866) target = $region105
        $region104: #{vgcl_forward.2} parent=96 // pred_region
          %s869 = smul.u32 16, %s34
          %p870 = scmp.lt.s32.totalorder %s869, 47
          %s871 = scalar_select %p870, %s869, 47
          %s872 = smul.addr %s871, 8
          %s873 = scalar_lea.vmem %s6, %s872
        $region105: #{vgcl_forward.2} parent=96 // pred_fallthru
          _
      $region97: #{vgcl_forward.2} parent=5 // pred_fallthru
        _
    $region6: #{vgcl_forward.2} parent=1 // loop_footer
      %s27 = sadd.s32 1, %s23
    $region7: #{vgcl_forward.2} parent=1 // loop_footer_branch
      %22 = sbr.rel target = $region3
    $region8: #{vgcl_forward.2} parent=1 // loop_exit
      _

// kernel: vgcl_forward.3
$region0: #{vgcl_forward.3}
  #allocation0 [shape = 'u32[]', space=smem, size = 0x4, offset = 0x4, fixed_abs, tag = 'smem constant byte address 0x4 - core index']
  #allocation1 [shape = 'u32[144,128]{1,0:T(1,128)}', space=vmem, size = 0x12000, scoped, tag = 'internal scratch']
  #allocation2 [shape = 'f32[128,128]{1,0:T(8,128)}', space=vmem, size = 0x10000, scoped, tag = 'scratch operand']
  #allocation3 [shape = 's32[1]{0}', space=sflag, size = 0x4, scoped, tag = 'scoped memory for vgcl_forward.3']
  #allocation4 [shape = 'u8[512]{0}', space=smem, size = 0x200, scoped, tag = 'prefetched SMEM operand 0']
  #allocation5 [shape = 'u8[512]{0}', space=smem, size = 0x200, scoped, tag = 'prefetched SMEM operand 1']
  %s0 = inlined_call_operand.vmem [shape: s32[9], index: 0, kind: input, shape index: {}]
  %s1 = inlined_call_operand.vmem [shape: s32[3], index: 1, kind: input, shape index: {}]
  %s2 = inlined_call_operand.vmem [shape: bf16[384,384], index: 2, kind: input, shape index: {}]
  %s3 = inlined_call_operand.vmem [shape: bf16[384,128], index: 3, kind: input, shape index: {}]
  %s4 = inlined_call_operand.vmem [shape: f32[384,128], index: 4, kind: input, shape index: {}]
  %s5 = inlined_call_operand.vmem [shape: bf16[128,128], index: 5, kind: input, shape index: {}]
  %s6 = inlined_call_operand.vmem [shape: f32[1,128], index: 6, kind: input, shape index: {}]
  %s7 = inlined_call_operand.vmem [shape: bf16[384,128], index: 7, kind: input, shape index: {}]
  %s8 = inlined_call_operand.vmem [shape: bf16[384,128], index: 8, kind: input, shape index: {}]
  %s9 = inlined_call_operand.vmem [shape: f32[384,128], index: 9, kind: output, shape index: {0}]
  %s10 = inlined_call_operand.vmem [shape: f32[384,128], index: 10, kind: output, shape index: {1}]
  %s11 = inlined_call_operand.vmem [shape: f32[384,128], index: 11, kind: output, shape index: {2}]
  %s12 = inlined_call_operand.vmem [shape: f32[384,128], index: 12, kind: output, shape index: {3}]
  %13 = xla_tuple %s9, %s10, %s11, %s12
  %s14 = sld [smem:[#allocation0]]
  $region138: #{vgcl_forward.3} parent=0
    _
  %s16 = ssub.s32 1, %s14
  %s17 = scalar_select 0, %s16, %s14
  %s18 = sshll.u32 %s0, 4
  %s19 = int_to_ptr.vmem [resolvable:$true] %s18
  %21 = dma.vmem_to_smem %s19, 16, [#allocation4], [#allocation3]
  %s22 = sshll.u32 %s1, 4
  %s23 = int_to_ptr.vmem [resolvable:$true] %s22
  %25 = dma.vmem_to_smem %s23, 16, [#allocation5], [#allocation3]
  %26 = dma.done [#allocation3], 32
  %27 = sfence
  $region1: #{vgcl_forward.3} parent=0
    #allocation6 [shape = 'u8[65536]{0}', space=vmem, size = 0x10000, scoped, tag = 'input window, operand 2']
    loop: start=0, step=1, limit=11
    $region2: #{vgcl_forward.3} parent=1 // loop_pre_header
      _
    $region3: #{vgcl_forward.3} parent=1 // loop_header
      %s29 = sphi 0, %s33
      %p30 = scmp.ge.s32.totalorder %s29, 11
      %s36 = sphi 0, %s48
      %s37 = sphi 0, %s44
      %s38 = sphi 0, %s36
      %s39 = sphi 0, %s37
      %s40 = sphi 0, %s38
      %s41 = sphi 0, %s39
      %s59 = sphi 0, %s61
      %s62 = sphi 0, %s59
      %s63 = sphi 0, %s62
      %s79 = sphi 0, %s63
      %s83 = sphi 0, %s83
      %s85 = sphi 0, %s83
      %s86 = sphi 0, %s85
      %s100 = sphi 0, %s86
      %s106 = sphi 0, %s108
      %s109 = sphi 0, %s106
      %s110 = sphi 0, %s109
      %s126 = sphi 0, %s110
      %s130 = sphi 0, %s130
      %s132 = sphi 0, %s130
      %s133 = sphi 0, %s132
      %s147 = sphi 0, %s133
      %s151 = sphi 0, %s151
      %s153 = sphi 0, %s151
      %s154 = sphi 0, %s153
      %s168 = sphi 0, %s154
      %s174 = sphi 0, %s176
      %s177 = sphi 0, %s174
      %s178 = sphi 0, %s177
      %s194 = sphi 0, %s178
      %s200 = sphi 0, %s202
      %s203 = sphi 0, %s200
      %s204 = sphi 0, %s203
      %s220 = sphi 0, %s204
      %s226 = sphi 0, %s228
      %s229 = sphi 0, %s226
      %s230 = sphi 0, %s229
      %s246 = sphi 0, %s230
      %s252 = sphi 0, %s254
      %s255 = sphi 0, %s252
      %s256 = sphi 0, %s255
      %s272 = sphi 0, %s256
      %s278 = sphi 0, %s280
      %s281 = sphi 0, %s278
      %s282 = sphi 0, %s281
      %s298 = sphi 0, %s282
      %s304 = sphi 0, %s306
      %s307 = sphi 0, %s304
      %s308 = sphi 0, %s307
      %s324 = sphi 0, %s308
    $region4: #{vgcl_forward.3} parent=1 // loop_header_branch
      %32 = sbr.rel (%p30) target = $region8
    $region5: #{vgcl_forward.3} parent=1 // loop_body
      %s34 = ssub.s32 %s29, 1
      %s35 = ssub.s32 %s29, 2
      %s42 = sadd.s32 1, %s37
      %p43 = scmp.ge.s32.totalorder %s42, 3
      %s44 = scalar_select %p43, 0, %s42
      %s45 = sadd.s32 1, %s36
      %s46 = scalar_select %p43, %s45, %s36
      %p47 = scmp.ge.s32.totalorder %s46, 3
      %s48 = scalar_select %p47, 0, %s46
      %s49 = smul.u32 %s36, 3
      %s50 = sadd.s32 %s49, %s37
      %s51 = sld [smem:[#allocation4 + %s50]]
      %s52 = smul.u32 %s48, 3
      %s53 = sadd.s32 %s52, %s44
      %s54 = sld [smem:[#allocation4 + %s53]]
      %s55 = ssub.s32 %s36, %s48
      %s56 = ssub.s32 %s51, %s54
      %s57 = sor.u32 %s55, %s56
      %p58 = scmp.eq.s32.totalorder %s57, 0
      %s60 = sadd.s32 %s59, 1
      %s61 = scalar_select %p58, %s59, %s60
      %p64 = pneg %p58
      %p65 = scmp.eq.s32.totalorder %s29, 8
      %p66 = por %p64, %p65
      %p67 = scmp.ne.s32.totalorder %s59, %s62
      %p68 = scmp.eq.s32.totalorder %s29, 0
      %p69 = por %p67, %p68
      %p70 = scmp.ne.s32.totalorder %s59, %s62
      %p71 = scmp.eq.s32.totalorder %s34, 8
      %p72 = por %p70, %p71
      %p73 = scmp.ne.s32.totalorder %s62, %s63
      %p74 = scmp.eq.s32.totalorder %s34, 0
      %p75 = por %p73, %p74
      %p76 = scmp.ne.s32.totalorder %s62, %s63
      %p77 = scmp.eq.s32.totalorder %s35, 8
      %p78 = por %p76, %p77
      %p80 = scmp.ne.s32.totalorder %s63, %s79
      %p81 = scmp.eq.s32.totalorder %s35, 0
      %p82 = por %p80, %p81
      %s84 = sadd.s32 %s83, 1
      %p87 = scmp.eq.s32.totalorder %s29, 8
      %p88 = scmp.ne.s32.totalorder %s83, %s85
      %p89 = scmp.eq.s32.totalorder %s29, 0
      %p90 = por %p88, %p89
      %p91 = scmp.ne.s32.totalorder %s83, %s85
      %p92 = scmp.eq.s32.totalorder %s34, 8
      %p93 = por %p91, %p92
      %p94 = scmp.ne.s32.totalorder %s85, %s86
      %p95 = scmp.eq.s32.totalorder %s34, 0
      %p96 = por %p94, %p95
      %p97 = scmp.ne.s32.totalorder %s85, %s86
      %p98 = scmp.eq.s32.totalorder %s35, 8
      %p99 = por %p97, %p98
      %p101 = scmp.ne.s32.totalorder %s86, %s100
      %p102 = scmp.eq.s32.totalorder %s35, 0
      %p103 = por %p101, %p102
      %s104 = ssub.s32 %s36, %s48
      %p105 = scmp.eq.s32.totalorder %s104, 0
      %s107 = sadd.s32 %s106, 1
      %s108 = scalar_select %p105, %s106, %s107
      %p111 = pneg %p105
      %p112 = scmp.eq.s32.totalorder %s29, 8
      %p113 = por %p111, %p112
      %p114 = scmp.ne.s32.totalorder %s106, %s109
      %p115 = scmp.eq.s32.totalorder %s29, 0
      %p116 = por %p114, %p115
      %p117 = scmp.ne.s32.totalorder %s106, %s109
      %p118 = scmp.eq.s32.totalorder %s34, 8
      %p119 = por %p117, %p118
      %p120 = scmp.ne.s32.totalorder %s109, %s110
      %p121 = scmp.eq.s32.totalorder %s34, 0
      %p122 = por %p120, %p121
      %p123 = scmp.ne.s32.totalorder %s109, %s110
      %p124 = scmp.eq.s32.totalorder %s35, 8
      %p125 = por %p123, %p124
      %p127 = scmp.ne.s32.totalorder %s110, %s126
      %p128 = scmp.eq.s32.totalorder %s35, 0
      %p129 = por %p127, %p128
      %s131 = sadd.s32 %s130, 1
      %p134 = scmp.eq.s32.totalorder %s29, 8
      %p135 = scmp.ne.s32.totalorder %s130, %s132
      %p136 = scmp.eq.s32.totalorder %s29, 0
      %p137 = por %p135, %p136
      %p138 = scmp.ne.s32.totalorder %s130, %s132
      %p139 = scmp.eq.s32.totalorder %s34, 8
      %p140 = por %p138, %p139
      %p141 = scmp.ne.s32.totalorder %s132, %s133
      %p142 = scmp.eq.s32.totalorder %s34, 0
      %p143 = por %p141, %p142
      %p144 = scmp.ne.s32.totalorder %s132, %s133
      %p145 = scmp.eq.s32.totalorder %s35, 8
      %p146 = por %p144, %p145
      %p148 = scmp.ne.s32.totalorder %s133, %s147
      %p149 = scmp.eq.s32.totalorder %s35, 0
      %p150 = por %p148, %p149
      %s152 = sadd.s32 %s151, 1
      %p155 = scmp.eq.s32.totalorder %s29, 8
      %p156 = scmp.ne.s32.totalorder %s151, %s153
      %p157 = scmp.eq.s32.totalorder %s29, 0
      %p158 = por %p156, %p157
      %p159 = scmp.ne.s32.totalorder %s151, %s153
      %p160 = scmp.eq.s32.totalorder %s34, 8
      %p161 = por %p159, %p160
      %p162 = scmp.ne.s32.totalorder %s153, %s154
      %p163 = scmp.eq.s32.totalorder %s34, 0
      %p164 = por %p162, %p163
      %p165 = scmp.ne.s32.totalorder %s153, %s154
      %p166 = scmp.eq.s32.totalorder %s35, 8
      %p167 = por %p165, %p166
      %p169 = scmp.ne.s32.totalorder %s154, %s168
      %p170 = scmp.eq.s32.totalorder %s35, 0
      %p171 = por %p169, %p170
      %s172 = ssub.s32 %s36, %s48
      %p173 = scmp.eq.s32.totalorder %s172, 0
      %s175 = sadd.s32 %s174, 1
      %s176 = scalar_select %p173, %s174, %s175
      %p179 = pneg %p173
      %p180 = scmp.eq.s32.totalorder %s29, 8
      %p181 = por %p179, %p180
      %p182 = scmp.ne.s32.totalorder %s174, %s177
      %p183 = scmp.eq.s32.totalorder %s29, 0
      %p184 = por %p182, %p183
      %p185 = scmp.ne.s32.totalorder %s174, %s177
      %p186 = scmp.eq.s32.totalorder %s34, 8
      %p187 = por %p185, %p186
      %p188 = scmp.ne.s32.totalorder %s177, %s178
      %p189 = scmp.eq.s32.totalorder %s34, 0
      %p190 = por %p188, %p189
      %p191 = scmp.ne.s32.totalorder %s177, %s178
      %p192 = scmp.eq.s32.totalorder %s35, 8
      %p193 = por %p191, %p192
      %p195 = scmp.ne.s32.totalorder %s178, %s194
      %p196 = scmp.eq.s32.totalorder %s35, 0
      %p197 = por %p195, %p196
      %s198 = ssub.s32 %s36, %s48
      %p199 = scmp.eq.s32.totalorder %s198, 0
      %s201 = sadd.s32 %s200, 1
      %s202 = scalar_select %p199, %s200, %s201
      %p205 = pneg %p199
      %p206 = scmp.eq.s32.totalorder %s29, 8
      %p207 = por %p205, %p206
      %p208 = scmp.ne.s32.totalorder %s200, %s203
      %p209 = scmp.eq.s32.totalorder %s29, 0
      %p210 = por %p208, %p209
      %p211 = scmp.ne.s32.totalorder %s200, %s203
      %p212 = scmp.eq.s32.totalorder %s34, 8
      %p213 = por %p211, %p212
      %p214 = scmp.ne.s32.totalorder %s203, %s204
      %p215 = scmp.eq.s32.totalorder %s34, 0
      %p216 = por %p214, %p215
      %p217 = scmp.ne.s32.totalorder %s203, %s204
      %p218 = scmp.eq.s32.totalorder %s35, 8
      %p219 = por %p217, %p218
      %p221 = scmp.ne.s32.totalorder %s204, %s220
      %p222 = scmp.eq.s32.totalorder %s35, 0
      %p223 = por %p221, %p222
      %s224 = ssub.s32 %s36, %s48
      %p225 = scmp.eq.s32.totalorder %s224, 0
      %s227 = sadd.s32 %s226, 1
      %s228 = scalar_select %p225, %s226, %s227
      %p231 = pneg %p225
      %p232 = scmp.eq.s32.totalorder %s29, 8
      %p233 = por %p231, %p232
      %p234 = scmp.ne.s32.totalorder %s226, %s229
      %p235 = scmp.eq.s32.totalorder %s29, 0
      %p236 = por %p234, %p235
      %p237 = scmp.ne.s32.totalorder %s226, %s229
      %p238 = scmp.eq.s32.totalorder %s34, 8
      %p239 = por %p237, %p238
      %p240 = scmp.ne.s32.totalorder %s229, %s230
      %p241 = scmp.eq.s32.totalorder %s34, 0
      %p242 = por %p240, %p241
      %p243 = scmp.ne.s32.totalorder %s229, %s230
      %p244 = scmp.eq.s32.totalorder %s35, 8
      %p245 = por %p243, %p244
      %p247 = scmp.ne.s32.totalorder %s230, %s246
      %p248 = scmp.eq.s32.totalorder %s35, 0
      %p249 = por %p247, %p248
      %s250 = ssub.s32 %s36, %s48
      %p251 = scmp.eq.s32.totalorder %s250, 0
      %s253 = sadd.s32 %s252, 1
      %s254 = scalar_select %p251, %s252, %s253
      %p257 = pneg %p251
      %p258 = scmp.eq.s32.totalorder %s29, 8
      %p259 = por %p257, %p258
      %p260 = scmp.ne.s32.totalorder %s252, %s255
      %p261 = scmp.eq.s32.totalorder %s29, 0
      %p262 = por %p260, %p261
      %p263 = scmp.ne.s32.totalorder %s252, %s255
      %p264 = scmp.eq.s32.totalorder %s34, 8
      %p265 = por %p263, %p264
      %p266 = scmp.ne.s32.totalorder %s255, %s256
      %p267 = scmp.eq.s32.totalorder %s34, 0
      %p268 = por %p266, %p267
      %p269 = scmp.ne.s32.totalorder %s255, %s256
      %p270 = scmp.eq.s32.totalorder %s35, 8
      %p271 = por %p269, %p270
      %p273 = scmp.ne.s32.totalorder %s256, %s272
      %p274 = scmp.eq.s32.totalorder %s35, 0
      %p275 = por %p273, %p274
      %s276 = ssub.s32 %s36, %s48
      %p277 = scmp.eq.s32.totalorder %s276, 0
      %s279 = sadd.s32 %s278, 1
      %s280 = scalar_select %p277, %s278, %s279
      %p283 = pneg %p277
      %p284 = scmp.eq.s32.totalorder %s29, 8
      %p285 = por %p283, %p284
      %p286 = scmp.ne.s32.totalorder %s278, %s281
      %p287 = scmp.eq.s32.totalorder %s29, 0
      %p288 = por %p286, %p287
      %p289 = scmp.ne.s32.totalorder %s278, %s281
      %p290 = scmp.eq.s32.totalorder %s34, 8
      %p291 = por %p289, %p290
      %p292 = scmp.ne.s32.totalorder %s281, %s282
      %p293 = scmp.eq.s32.totalorder %s34, 0
      %p294 = por %p292, %p293
      %p295 = scmp.ne.s32.totalorder %s281, %s282
      %p296 = scmp.eq.s32.totalorder %s35, 8
      %p297 = por %p295, %p296
      %p299 = scmp.ne.s32.totalorder %s282, %s298
      %p300 = scmp.eq.s32.totalorder %s35, 0
      %p301 = por %p299, %p300
      %s302 = ssub.s32 %s36, %s48
      %p303 = scmp.eq.s32.totalorder %s302, 0
      %s305 = sadd.s32 %s304, 1
      %s306 = scalar_select %p303, %s304, %s305
      %p309 = pneg %p303
      %p310 = scmp.eq.s32.totalorder %s29, 8
      %p311 = por %p309, %p310
      %p312 = scmp.ne.s32.totalorder %s304, %s307
      %p313 = scmp.eq.s32.totalorder %s29, 0
      %p314 = por %p312, %p313
      %p315 = scmp.ne.s32.totalorder %s304, %s307
      %p316 = scmp.eq.s32.totalorder %s34, 8
      %p317 = por %p315, %p316
      %p318 = scmp.ne.s32.totalorder %s307, %s308
      %p319 = scmp.eq.s32.totalorder %s34, 0
      %p320 = por %p318, %p319
      %p321 = scmp.ne.s32.totalorder %s307, %s308
      %p322 = scmp.eq.s32.totalorder %s35, 8
      %p323 = por %p321, %p322
      %p325 = scmp.ne.s32.totalorder %s308, %s324
      %p326 = scmp.eq.s32.totalorder %s35, 0
      %p327 = por %p325, %p326
      %p328 = scmp.le.s32.totalorder 1, %s29
      %p329 = scmp.lt.s32.totalorder %s29, 10
      %p330 = pnand %p328, %p329
      %p331 = pneg %p330
      // Predicated region
      $region9: #{vgcl_forward.3} parent=5 // pred_check
        _
      $region10: #{vgcl_forward.3} parent=5 // pred_check_branch
        %333 = sbr.rel (%p330) target = $region12
      $region11: #{vgcl_forward.3} parent=5 // pred_region
        %s334 = ssub.s32 %s29, 1
        // Predicated region
        $region13: #{vgcl_forward.3} parent=11 // pred_check
          %p335 = pneg %p96
        $region14: #{vgcl_forward.3} parent=11 // pred_check_branch
          %337 = sbr.rel (%p335) target = $region16
        $region15: #{vgcl_forward.3} parent=11 // pred_region
          _
        $region16: #{vgcl_forward.3} parent=11 // pred_fallthru
          _
        // Predicated region
        $region17: #{vgcl_forward.3} parent=11 // pred_check
          %p338 = pneg %p143
        $region18: #{vgcl_forward.3} parent=11 // pred_check_branch
          %340 = sbr.rel (%p338) target = $region20
        $region19: #{vgcl_forward.3} parent=11 // pred_region
          _
        $region20: #{vgcl_forward.3} parent=11 // pred_fallthru
          _
        // Predicated region
        $region21: #{vgcl_forward.3} parent=11 // pred_check
          %p341 = pneg %p164
        $region22: #{vgcl_forward.3} parent=11 // pred_check_branch
          %343 = sbr.rel (%p341) target = $region24
        $region23: #{vgcl_forward.3} parent=11 // pred_region
          _
        $region24: #{vgcl_forward.3} parent=11 // pred_fallthru
          _
      $region12: #{vgcl_forward.3} parent=5 // pred_fallthru
        _
      %p344 = scmp.lt.s32.totalorder %s29, 9
      // Predicated region
      $region25: #{vgcl_forward.3} parent=5 // pred_check
        %p345 = pneg %p344
      $region26: #{vgcl_forward.3} parent=5 // pred_check_branch
        %347 = sbr.rel (%p345) target = $region28
      $region27: #{vgcl_forward.3} parent=5 // pred_region
        // Predicated region
        $region29: #{vgcl_forward.3} parent=27 // pred_check
          %p348 = pneg %p69
        $region30: #{vgcl_forward.3} parent=27 // pred_check_branch
          %350 = sbr.rel (%p348) target = $region32
        $region31: #{vgcl_forward.3} parent=27 // pred_region
          %s351 = sand.u32 %s59, 1
          %s352 = sand.u32 %s59, 1
          %s353 = smul.addr %s352, 64
          %s354 = scalar_lea.vmem [#allocation6], %s353
          %s355 = smul.u32 %s36, 3
          %s356 = sadd.s32 %s355, %s37
          %s357 = sld [smem:[#allocation4 + %s356]]
          %s358 = smul.u32 16, %s36
          %s359 = smul.addr %s358, 3
          %s360 = sadd.s32 %s357, %s359
          %s361 = smul.addr %s360, 4
          %s362 = scalar_lea.vmem %s2, %s361
          // Predicated region
          $region33: #{vgcl_forward.3} parent=31 // pred_check
            _
          $region34: #{vgcl_forward.3} parent=31 // pred_check_branch
            %364 = sbr.rel (0) target = $region36
          $region35: #{vgcl_forward.3} parent=31 // pred_region
            // Predicated region
            $region37: #{vgcl_forward.3} parent=35 // pred_check
              _
            $region38: #{vgcl_forward.3} parent=35 // pred_check_branch
              %366 = sbr.rel target = $region40
            $region39: #{vgcl_forward.3} parent=35 // pred_region
              // Predicated region
              $region52: #{vgcl_forward.3} parent=39 // pred_check
                _
              $region53: #{vgcl_forward.3} parent=39 // pred_check_branch
                %412 = sbr.rel (0) target = $region55
              $region54: #{vgcl_forward.3} parent=39 // pred_region
                loop: start=0, step=1, limit=1
                $region56: #{vgcl_forward.3} parent=54 // loop_pre_header
                  _
                $region57: #{vgcl_forward.3} parent=54 // loop_header
                  %s414 = sphi 0, %s418
                  %p415 = scmp.ge.s32.totalorder %s414, 1
                  %s419 = sphi %s362, %s362
                  %s420 = sphi %s354, %s354
                $region58: #{vgcl_forward.3} parent=54 // loop_header_branch
                  %417 = sbr.rel (%p415) target = $region62
                $region59: #{vgcl_forward.3} parent=54 // loop_body
                  _
                $region60: #{vgcl_forward.3} parent=54 // loop_footer
                  %s418 = sadd.s32 1, %s414
                $region61: #{vgcl_forward.3} parent=54 // loop_footer_branch
                  %413 = sbr.rel target = $region57
                $region62: #{vgcl_forward.3} parent=54 // loop_exit
                  _
                %s422 = ssub.s32 16, 1
                loop: start=0, step=1, limit=1
                $region63: #{vgcl_forward.3} parent=54 // loop_pre_header
                  _
                $region64: #{vgcl_forward.3} parent=54 // loop_header
                  %s424 = sphi 0, %s428
                  %p425 = scmp.ge.s32.totalorder %s424, 1
                  %s429 = sphi %s362, %s362
                  %s430 = sphi %s354, %s354
                $region65: #{vgcl_forward.3} parent=54 // loop_header_branch
                  %427 = sbr.rel (%p425) target = $region69
                $region66: #{vgcl_forward.3} parent=54 // loop_body
                  %v431 = vld [vmem:[%s429] sm:%s422]
                  %432 = vst [vmem:[%s430] sm:%s422] %v431
                  %v433 = vld [vmem:[%s429 + $0xc] sm:%s422]
                  %434 = vst [vmem:[%s430 + $0x4] sm:%s422] %v433
                  %v435 = vld [vmem:[%s429 + $0x18] sm:%s422]
                  %436 = vst [vmem:[%s430 + $0x8] sm:%s422] %v435
                  %v437 = vld [vmem:[%s429 + $0x24] sm:%s422]
                  %438 = vst [vmem:[%s430 + $0xc] sm:%s422] %v437
                  %v439 = vld [vmem:[%s429 + $0x30] sm:%s422]
                  %440 = vst [vmem:[%s430 + $0x10] sm:%s422] %v439
                  %v441 = vld [vmem:[%s429 + $0x3c] sm:%s422]
                  %442 = vst [vmem:[%s430 + $0x14] sm:%s422] %v441
                  %v443 = vld [vmem:[%s429 + $0x48] sm:%s422]
                  %444 = vst [vmem:[%s430 + $0x18] sm:%s422] %v443
                  %v445 = vld [vmem:[%s429 + $0x54] sm:%s422]
                  %446 = vst [vmem:[%s430 + $0x1c] sm:%s422] %v445
                  %v447 = vld [vmem:[%s429 + $0x60] sm:%s422]
                  %448 = vst [vmem:[%s430 + $0x20] sm:%s422] %v447
                  %v449 = vld [vmem:[%s429 + $0x6c] sm:%s422]
                  %450 = vst [vmem:[%s430 + $0x24] sm:%s422] %v449
                  %v451 = vld [vmem:[%s429 + $0x78] sm:%s422]
                  %452 = vst [vmem:[%s430 + $0x28] sm:%s422] %v451
                  %v453 = vld [vmem:[%s429 + $0x84] sm:%s422]
                  %454 = vst [vmem:[%s430 + $0x2c] sm:%s422] %v453
                  %v455 = vld [vmem:[%s429 + $0x90] sm:%s422]
                  %456 = vst [vmem:[%s430 + $0x30] sm:%s422] %v455
                  %v457 = vld [vmem:[%s429 + $0x9c] sm:%s422]
                  %458 = vst [vmem:[%s430 + $0x34] sm:%s422] %v457
                  %v459 = vld [vmem:[%s429 + $0xa8] sm:%s422]
                  %460 = vst [vmem:[%s430 + $0x38] sm:%s422] %v459
                  %v461 = vld [vmem:[%s429 + $0xb4] sm:%s422]
                  %462 = vst [vmem:[%s430 + $0x3c] sm:%s422] %v461
                $region67: #{vgcl_forward.3} parent=54 // loop_footer
                  %s428 = sadd.s32 1, %s424
                $region68: #{vgcl_forward.3} parent=54 // loop_footer_branch
                  %423 = sbr.rel target = $region64
                $region69: #{vgcl_forward.3} parent=54 // loop_exit
                  _
              $region55: #{vgcl_forward.3} parent=39 // pred_fallthru
                _
            $region40: #{vgcl_forward.3} parent=35 // pred_fallthru
              _
            // Predicated region
            $region41: #{vgcl_forward.3} parent=35 // pred_check
              _
            $region42: #{vgcl_forward.3} parent=35 // pred_check_branch
              %368 = sbr.rel (0) target = $region44
            $region43: #{vgcl_forward.3} parent=35 // pred_region
              %s370 = ssub.s32 16, 1
              loop: start=0, step=1, limit=1
              $region45: #{vgcl_forward.3} parent=43 // loop_pre_header
                _
              $region46: #{vgcl_forward.3} parent=43 // loop_header
                %s372 = sphi 0, %s376
                %p373 = scmp.ge.s32.totalorder %s372, 1
                %s377 = sphi %s362, %s362
                %s378 = sphi %s354, %s354
              $region47: #{vgcl_forward.3} parent=43 // loop_header_branch
                %375 = sbr.rel (%p373) target = $region51
              $region48: #{vgcl_forward.3} parent=43 // loop_body
                %v379 = vld [vmem:[%s377] sm:%s370]
                %380 = vst [vmem:[%s378] sm:%s370] %v379
                %v381 = vld [vmem:[%s377 + $0xc] sm:%s370]
                %382 = vst [vmem:[%s378 + $0x4] sm:%s370] %v381
                %v383 = vld [vmem:[%s377 + $0x18] sm:%s370]
                %384 = vst [vmem:[%s378 + $0x8] sm:%s370] %v383
                %v385 = vld [vmem:[%s377 + $0x24] sm:%s370]
                %386 = vst [vmem:[%s378 + $0xc] sm:%s370] %v385
                %v387 = vld [vmem:[%s377 + $0x30] sm:%s370]
                %388 = vst [vmem:[%s378 + $0x10] sm:%s370] %v387
                %v389 = vld [vmem:[%s377 + $0x3c] sm:%s370]
                %390 = vst [vmem:[%s378 + $0x14] sm:%s370] %v389
                %v391 = vld [vmem:[%s377 + $0x48] sm:%s370]
                %392 = vst [vmem:[%s378 + $0x18] sm:%s370] %v391
                %v393 = vld [vmem:[%s377 + $0x54] sm:%s370]
                %394 = vst [vmem:[%s378 + $0x1c] sm:%s370] %v393
                %v395 = vld [vmem:[%s377 + $0x60] sm:%s370]
                %396 = vst [vmem:[%s378 + $0x20] sm:%s370] %v395
                %v397 = vld [vmem:[%s377 + $0x6c] sm:%s370]
                %398 = vst [vmem:[%s378 + $0x24] sm:%s370] %v397
                %v399 = vld [vmem:[%s377 + $0x78] sm:%s370]
                %400 = vst [vmem:[%s378 + $0x28] sm:%s370] %v399
                %v401 = vld [vmem:[%s377 + $0x84] sm:%s370]
                %402 = vst [vmem:[%s378 + $0x2c] sm:%s370] %v401
                %v403 = vld [vmem:[%s377 + $0x90] sm:%s370]
                %404 = vst [vmem:[%s378 + $0x30] sm:%s370] %v403
                %v405 = vld [vmem:[%s377 + $0x9c] sm:%s370]
                %406 = vst [vmem:[%s378 + $0x34] sm:%s370] %v405
                %v407 = vld [vmem:[%s377 + $0xa8] sm:%s370]
                %408 = vst [vmem:[%s378 + $0x38] sm:%s370] %v407
                %v409 = vld [vmem:[%s377 + $0xb4] sm:%s370]
                %410 = vst [vmem:[%s378 + $0x3c] sm:%s370] %v409
              $region49: #{vgcl_forward.3} parent=43 // loop_footer
                %s376 = sadd.s32 1, %s372
              $region50: #{vgcl_forward.3} parent=43 // loop_footer_branch
                %371 = sbr.rel target = $region46
              $region51: #{vgcl_forward.3} parent=43 // loop_exit
                _
            $region44: #{vgcl_forward.3} parent=35 // pred_fallthru
              _
          $region36: #{vgcl_forward.3} parent=31 // pred_fallthru
            _
          %463 = vnop
        $region32: #{vgcl_forward.3} parent=27 // pred_fallthru
          _
        // Predicated region
        $region70: #{vgcl_forward.3} parent=27 // pred_check
          %p464 = pneg %p116
        $region71: #{vgcl_forward.3} parent=27 // pred_check_branch
          %466 = sbr.rel (%p464) target = $region73
        $region72: #{vgcl_forward.3} parent=27 // pred_region
          %s467 = smul.u32 16, %s36
          %p468 = scmp.lt.s32.totalorder %s467, 47
          %s469 = scalar_select %p468, %s467, 47
          %s470 = smul.addr %s469, 8
          %s471 = scalar_lea.vmem %s4, %s470
          %s472 = smul.u32 16, %s36
        $region73: #{vgcl_forward.3} parent=27 // pred_fallthru
          _
        // Predicated region
        $region74: #{vgcl_forward.3} parent=27 // pred_check
          %p473 = pneg %p184
        $region75: #{vgcl_forward.3} parent=27 // pred_check_branch
          %475 = sbr.rel (%p473) target = $region77
        $region76: #{vgcl_forward.3} parent=27 // pred_region
          %s476 = smul.u32 16, %s36
          %p477 = scmp.lt.s32.totalorder %s476, 47
          %s478 = scalar_select %p477, %s476, 47
          %s479 = smul.addr %s478, 4
          %s480 = scalar_lea.vmem %s7, %s479
          %s481 = smul.u32 16, %s36
        $region77: #{vgcl_forward.3} parent=27 // pred_fallthru
          _
        // Predicated region
        $region78: #{vgcl_forward.3} parent=27 // pred_check
          %p482 = pneg %p210
        $region79: #{vgcl_forward.3} parent=27 // pred_check_branch
          %484 = sbr.rel (%p482) target = $region81
        $region80: #{vgcl_forward.3} parent=27 // pred_region
          %s485 = smul.u32 16, %s36
          %p486 = scmp.lt.s32.totalorder %s485, 47
          %s487 = scalar_select %p486, %s485, 47
          %s488 = smul.addr %s487, 4
          %s489 = scalar_lea.vmem %s8, %s488
          %s490 = smul.u32 16, %s36
        $region81: #{vgcl_forward.3} parent=27 // pred_fallthru
          _
      $region28: #{vgcl_forward.3} parent=5 // pred_fallthru
        _
      %p491 = scmp.le.s32.totalorder 1, %s29
      %p492 = scmp.lt.s32.totalorder %s29, 10
      %p493 = pnand %p491, %p492
      %p494 = pneg %p493
      // Predicated region
      $region82: #{vgcl_forward.3} parent=5 // pred_check
        _
      $region83: #{vgcl_forward.3} parent=5 // pred_check_branch
        %496 = sbr.rel (%p493) target = $region85
      $region84: #{vgcl_forward.3} parent=5 // pred_region
        %s497 = ssub.s32 %s29, 1
        %s498 = sand.u32 %s62, 1
        %s499 = sand.u32 %s62, 1
        %s500 = smul.addr %s499, 64
        %s501 = scalar_lea.vmem [#allocation6], %s500
        // Predicated region
        $region86: #{vgcl_forward.3} parent=84 // pred_check
          %p502 = pneg %p75
        $region87: #{vgcl_forward.3} parent=84 // pred_check_branch
          %504 = sbr.rel (%p502) target = $region89
        $region88: #{vgcl_forward.3} parent=84 // pred_region
          _
        $region89: #{vgcl_forward.3} parent=84 // pred_fallthru
          _
        %s505 = sand.u32 %s62, 1
        %s506 = sand.u32 %s62, 1
        %s507 = smul.addr %s506, 64
        %s508 = scalar_lea.vmem [#allocation6], %s507
        %p509 = pneg %p75
        %p510 = pneg %p72
        %p511 = pneg %p96
        %p512 = pneg %p93
        %s513 = smul.u32 16, %s38
        %p514 = scmp.lt.s32.totalorder %s513, 47
        %s515 = scalar_select %p514, %s513, 47
        %s516 = smul.addr %s515, 8
        %s517 = scalar_lea.vmem %s4, %s516
        %p518 = pneg %p122
        %p519 = pneg %p119
        %p520 = pneg %p143
        %p521 = pneg %p140
        %p522 = pneg %p164
        %p523 = pneg %p161
        %s524 = smul.u32 16, %s38
        %p525 = scmp.lt.s32.totalorder %s524, 47
        %s526 = scalar_select %p525, %s524, 47
        %s527 = smul.addr %s526, 4
        %s528 = scalar_lea.vmem %s7, %s527
        %p529 = pneg %p190
        %p530 = pneg %p187
        %s531 = smul.u32 16, %s38
        %p532 = scmp.lt.s32.totalorder %s531, 47
        %s533 = scalar_select %p532, %s531, 47
        %s534 = smul.addr %s533, 4
        %s535 = scalar_lea.vmem %s8, %s534
        %p536 = pneg %p216
        %p537 = pneg %p213
        %p538 = pneg %p242
        %p539 = pneg %p239
        %s540 = smul.u32 16, %s38
        %p541 = scmp.lt.s32.totalorder %s540, 47
        %s542 = scalar_select %p541, %s540, 47
        %s543 = smul.addr %s542, 8
        %s544 = scalar_lea.vmem %s9, %s543
        %p545 = pneg %p268
        %p546 = pneg %p265
        %s547 = smul.u32 16, %s38
        %p548 = scmp.lt.s32.totalorder %s547, 47
        %s549 = scalar_select %p548, %s547, 47
        %s550 = smul.addr %s549, 8
        %s551 = scalar_lea.vmem %s10, %s550
        %p552 = pneg %p294
        %p553 = pneg %p291
        %s554 = smul.u32 16, %s38
        %p555 = scmp.lt.s32.totalorder %s554, 47
        %s556 = scalar_select %p555, %s554, 47
        %s557 = smul.addr %s556, 8
        %s558 = scalar_lea.vmem %s11, %s557
        %p559 = pneg %p320
        %p560 = pneg %p317
        %s561 = smul.u32 16, %s38
        %p562 = scmp.lt.s32.totalorder %s561, 47
        %s563 = scalar_select %p562, %s561, 47
        %s564 = smul.addr %s563, 8
        %s565 = scalar_lea.vmem %s12, %s564
        %s566 = smul.u32 %s38, 3
        %s567 = sadd.s32 %s566, %s39
        %s568 = sld [smem:[#allocation4 + %s567]]
        %s569 = smul.u32 16, %s38
        %s570 = smul.u32 16, %s38
        %p571 = scmp.lt.s32.totalorder %s570, 47
        %s572 = scalar_select %p571, %s570, 47
        %s573 = smul.addr %s572, 8
        %s574 = scalar_lea.vmem %s4, %s573
        %s575 = smul.u32 16, %s38
        %s576 = smul.u32 16, %s38
        %p577 = scmp.lt.s32.totalorder %s576, 47
        %s578 = scalar_select %p577, %s576, 47
        %s579 = smul.addr %s578, 4
        %s580 = scalar_lea.vmem %s7, %s579
        %s581 = smul.u32 16, %s38
        %s582 = smul.u32 16, %s38
        %p583 = scmp.lt.s32.totalorder %s582, 47
        %s584 = scalar_select %p583, %s582, 47
        %s585 = smul.addr %s584, 4
        %s586 = scalar_lea.vmem %s8, %s585
        %s587 = smul.u32 16, %s38
        %s588 = smul.u32 16, %s38
        %p589 = scmp.lt.s32.totalorder %s588, 47
        %s590 = scalar_select %p589, %s588, 47
        %s591 = smul.addr %s590, 8
        %s592 = scalar_lea.vmem %s9, %s591
        %s593 = smul.u32 16, %s38
        %s594 = smul.u32 16, %s38
        %p595 = scmp.lt.s32.totalorder %s594, 47
        %s596 = scalar_select %p595, %s594, 47
        %s597 = smul.addr %s596, 8
        %s598 = scalar_lea.vmem %s10, %s597
        %s599 = smul.u32 16, %s38
        %s600 = smul.u32 16, %s38
        %p601 = scmp.lt.s32.totalorder %s600, 47
        %s602 = scalar_select %p601, %s600, 47
        %s603 = smul.addr %s602, 8
        %s604 = scalar_lea.vmem %s11, %s603
        %s605 = smul.u32 16, %s38
        %s606 = smul.u32 16, %s38
        %p607 = scmp.lt.s32.totalorder %s606, 47
        %s608 = scalar_select %p607, %s606, 47
        %s609 = smul.addr %s608, 8
        %s610 = scalar_lea.vmem %s12, %s609
        %s611 = smul.u32 16, %s38
        %p613 = scmp.eq.s32.totalorder %s39, 0
        // Predicated region
        $region90: #{vgcl_forward.3} parent=84 // pred_check
          %p614 = pneg %p613
        $region91: #{vgcl_forward.3} parent=84 // pred_check_branch
          %616 = sbr.rel (%p614) target = $region93
        $region92: #{vgcl_forward.3} parent=84 // pred_region
          %617 = vst [vmem:[#allocation2] sm:$0xff] 0.0
          %618 = vst [vmem:[#allocation2 + $0x8] sm:$0xff] 0.0
          %619 = vst [vmem:[#allocation2 + $0x10] sm:$0xff] 0.0
          %620 = vst [vmem:[#allocation2 + $0x18] sm:$0xff] 0.0
          %621 = vst [vmem:[#allocation2 + $0x20] sm:$0xff] 0.0
          %622 = vst [vmem:[#allocation2 + $0x28] sm:$0xff] 0.0
          %623 = vst [vmem:[#allocation2 + $0x30] sm:$0xff] 0.0
          %624 = vst [vmem:[#allocation2 + $0x38] sm:$0xff] 0.0
          %625 = vst [vmem:[#allocation2 + $0x40] sm:$0xff] 0.0
          %626 = vst [vmem:[#allocation2 + $0x48] sm:$0xff] 0.0
          %627 = vst [vmem:[#allocation2 + $0x50] sm:$0xff] 0.0
          %628 = vst [vmem:[#allocation2 + $0x58] sm:$0xff] 0.0
          %629 = vst [vmem:[#allocation2 + $0x60] sm:$0xff] 0.0
          %630 = vst [vmem:[#allocation2 + $0x68] sm:$0xff] 0.0
          %631 = vst [vmem:[#allocation2 + $0x70] sm:$0xff] 0.0
          %632 = vst [vmem:[#allocation2 + $0x78] sm:$0xff] 0.0
        $region93: #{vgcl_forward.3} parent=84 // pred_fallthru
          _
        %s633 = sld [smem:[#allocation5 + %s38]]
        %p634 = scmp.lt.s32.totalorder %s39, %s633
        // Predicated region
        $region94: #{vgcl_forward.3} parent=84 // pred_check
          %p635 = pneg %p634
        $region95: #{vgcl_forward.3} parent=84 // pred_check_branch
          %637 = sbr.rel (%p635) target = $region97
        $region96: #{vgcl_forward.3} parent=84 // pred_region
          %s638 = smul.u32 %s38, 3
          %s639 = sadd.s32 %s638, %s39
          %s640 = sld [smem:[#allocation4 + %s639]]
          %s641 = smul.u32 %s640, 128
          %s642 = sshra.s32 %s641, 3
          %s643 = sand.u32 %s641, 7
          %s644 = smul.addr %s642, 4
          %s645 = scalar_lea.vmem %s3, %s644
          %v646 = vld [vmem:[%s645] sm:$0xf]
          %v647 = vld [vmem:[%s645 + $0x4] sm:$0xf]
          %v648 = vld [vmem:[%s645 + $0x8] sm:$0xf]
          %v649 = vld [vmem:[%s645 + $0xc] sm:$0xf]
          %v650 = vld [vmem:[%s645 + $0x10] sm:$0xf]
          %v651 = vld [vmem:[%s645 + $0x14] sm:$0xf]
          %v652 = vld [vmem:[%s645 + $0x18] sm:$0xf]
          %v653 = vld [vmem:[%s645 + $0x1c] sm:$0xf]
          %v654 = vld [vmem:[%s645 + $0x20] sm:$0xf]
          %v655 = vld [vmem:[%s645 + $0x24] sm:$0xf]
          %v656 = vld [vmem:[%s645 + $0x28] sm:$0xf]
          %v657 = vld [vmem:[%s645 + $0x2c] sm:$0xf]
          %v658 = vld [vmem:[%s645 + $0x30] sm:$0xf]
          %v659 = vld [vmem:[%s645 + $0x34] sm:$0xf]
          %v660 = vld [vmem:[%s645 + $0x38] sm:$0xf]
          %v661 = vld [vmem:[%s645 + $0x3c] sm:$0xf]
          %v662 = vld [vmem:[#allocation2] sm:$0xff]
          %v663 = vld [vmem:[#allocation2 + $0x8] sm:$0xff]
          %v664 = vld [vmem:[#allocation2 + $0x10] sm:$0xff]
          %v665 = vld [vmem:[#allocation2 + $0x18] sm:$0xff]
          %v666 = vld [vmem:[#allocation2 + $0x20] sm:$0xff]
          %v667 = vld [vmem:[#allocation2 + $0x28] sm:$0xff]
          %v668 = vld [vmem:[#allocation2 + $0x30] sm:$0xff]
          %v669 = vld [vmem:[#allocation2 + $0x38] sm:$0xff]
          %v670 = vld [vmem:[#allocation2 + $0x40] sm:$0xff]
          %v671 = vld [vmem:[#allocation2 + $0x48] sm:$0xff]
          %v672 = vld [vmem:[#allocation2 + $0x50] sm:$0xff]
          %v673 = vld [vmem:[#allocation2 + $0x58] sm:$0xff]
          %v674 = vld [vmem:[#allocation2 + $0x60] sm:$0xff]
          %v675 = vld [vmem:[#allocation2 + $0x68] sm:$0xff]
          %v676 = vld [vmem:[#allocation2 + $0x70] sm:$0xff]
          %v677 = vld [vmem:[#allocation2 + $0x78] sm:$0xff]
          %v678 = vld [vmem:[%s501] sm:$0xf]
          %v679 = vld [vmem:[%s501 + $0x4] sm:$0xf]
          %v680 = vld [vmem:[%s501 + $0x8] sm:$0xf]
          %v681 = vld [vmem:[%s501 + $0xc] sm:$0xf]
          %v682 = vld [vmem:[%s501 + $0x10] sm:$0xf]
          %v683 = vld [vmem:[%s501 + $0x14] sm:$0xf]
          %v684 = vld [vmem:[%s501 + $0x18] sm:$0xf]
          %v685 = vld [vmem:[%s501 + $0x1c] sm:$0xf]
          %v686 = vld [vmem:[%s501 + $0x20] sm:$0xf]
          %v687 = vld [vmem:[%s501 + $0x24] sm:$0xf]
          %v688 = vld [vmem:[%s501 + $0x28] sm:$0xf]
          %v689 = vld [vmem:[%s501 + $0x2c] sm:$0xf]
          %v690 = vld [vmem:[%s501 + $0x30] sm:$0xf]
          %v691 = vld [vmem:[%s501 + $0x34] sm:$0xf]
          %v692 = vld [vmem:[%s501 + $0x38] sm:$0xf]
          %v693 = vld [vmem:[%s501 + $0x3c] sm:$0xf]
          %v710 = vunpack.c.l.b16 %v678
          %v711 = vunpack.c.l.b16 %v679
          %v712 = vunpack.c.l.b16 %v680
          %v713 = vunpack.c.l.b16 %v681
          %v714 = vunpack.c.l.b16 %v682
          %v715 = vunpack.c.l.b16 %v683
          %v716 = vunpack.c.l.b16 %v684
          %v717 = vunpack.c.l.b16 %v685
          %v718 = vunpack.c.l.b16 %v686
          %v719 = vunpack.c.l.b16 %v687
          %v720 = vunpack.c.l.b16 %v688
          %v721 = vunpack.c.l.b16 %v689
          %v722 = vunpack.c.l.b16 %v690
          %v723 = vunpack.c.l.b16 %v691
          %v724 = vunpack.c.l.b16 %v692
          %v725 = vunpack.c.l.b16 %v693
          %v726 = vpack.c.b16 %v711, %v710
          %v727 = vpack.c.b16 %v713, %v712
          %v728 = vpack.c.b16 %v715, %v714
          %v729 = vpack.c.b16 %v717, %v716
          %v730 = vpack.c.b16 %v719, %v718
          %v731 = vpack.c.b16 %v721, %v720
          %v732 = vpack.c.b16 %v723, %v722
          %v733 = vpack.c.b16 %v725, %v724
          %v758 = vunpack.c.l.b16 %v646
          %v759 = vunpack.c.l.b16 %v647
          %v760 = vunpack.c.l.b16 %v648
          %v761 = vunpack.c.l.b16 %v649
          %v762 = vunpack.c.l.b16 %v650
          %v763 = vunpack.c.l.b16 %v651
          %v764 = vunpack.c.l.b16 %v652
          %v765 = vunpack.c.l.b16 %v653
          %v766 = vunpack.c.l.b16 %v654
          %v767 = vunpack.c.l.b16 %v655
          %v768 = vunpack.c.l.b16 %v656
          %v769 = vunpack.c.l.b16 %v657
          %v770 = vunpack.c.l.b16 %v658
          %v771 = vunpack.c.l.b16 %v659
          %v772 = vunpack.c.l.b16 %v660
          %v773 = vunpack.c.l.b16 %v661
          %v774 = vpack.c.b16 %v759, %v758
          %v775 = vpack.c.b16 %v761, %v760
          %v776 = vpack.c.b16 %v763, %v762
          %v777 = vpack.c.b16 %v765, %v764
          %v778 = vpack.c.b16 %v767, %v766
          %v779 = vpack.c.b16 %v769, %v768
          %v780 = vpack.c.b16 %v771, %v770
          %v781 = vpack.c.b16 %v773, %v772
          %790 = vmatprep.subr.bf16.mxu0 0
          %791 = vmatpush1.bf16.msra.mxu0 %v781
          %792 = vmatprep.subr.bf16.mxu0 0
          %793 = vmatpush1.bf16.msra.mxu0 %v780
          %794 = vmatprep.subr.bf16.mxu0 0
          %795 = vmatpush1.bf16.msra.mxu0 %v779
          %796 = vmatprep.subr.bf16.mxu0 0
          %797 = vmatpush1.bf16.msra.mxu0 %v778
          %798 = vmatprep.subr.bf16.mxu0 0
          %799 = vmatpush1.bf16.msra.mxu0 %v777
          %800 = vmatprep.subr.bf16.mxu0 0
          %801 = vmatpush1.bf16.msra.mxu0 %v776
          %802 = vmatprep.subr.bf16.mxu0 0
          %803 = vmatpush1.bf16.msra.mxu0 %v775
          %804 = vmatprep.subr.bf16.mxu0 0
          %805 = vmatpush1.bf16.msra.mxu0 %v774
          %806 = vmatprep.subr.bf16.mxu0 0
          %807 = vmatpush2.bf16.msra.mxu0 0
          %808 = vmatprep.subr.bf16.mxu0 0
          %809 = vmatpush2.bf16.msra.mxu0 0
          %810 = vmatprep.subr.bf16.mxu0 0
          %811 = vmatpush2.bf16.msra.mxu0 0
          %812 = vmatprep.subr.bf16.mxu0 0
          %813 = vmatpush2.bf16.msra.mxu0 0
          %814 = vmatprep.subr.bf16.mxu0 0
          %815 = vmatpush2.bf16.msra.mxu0 0
          %816 = vmatprep.subr.bf16.mxu0 0
          %817 = vmatpush2.bf16.msra.mxu0 0
          %818 = vmatprep.subr.bf16.mxu0 0
          %819 = vmatpush2.bf16.msra.mxu0 0
          %820 = vmatprep.subr.bf16.mxu0 0
          %821 = vmatpush2.bf16.msra.mxu0 0
          %822 = vmatprep.mubr.bf16.mxu0 0
          %823 = vmatmul.mubr.bf16.gmra.mxu0 %v726
          %v824 = vpop.f32.mrf.mxu0
          %v825 = vadd.f32 0.0, %v824
          %v826 = vpop.f32.mrf.mxu0
          %v827 = vpop.f32.mrf.mxu0
          %v828 = vadd.f32 0.0, %v827
          %v829 = vpop.f32.mrf.mxu0
          %830 = vmatprep.mubr.bf16.mxu0 0
          %831 = vmatmul.mubr.bf16.gmra.mxu0 %v727
          %v832 = vpop.f32.mrf.mxu0
          %v833 = vadd.f32 0.0, %v832
          %v834 = vpop.f32.mrf.mxu0
          %v835 = vpop.f32.mrf.mxu0
          %v836 = vadd.f32 0.0, %v835
          %v837 = vpop.f32.mrf.mxu0
          %838 = vmatprep.mubr.bf16.mxu0 0
          %839 = vmatmul.mubr.bf16.gmra.mxu0 %v728
          %v840 = vpop.f32.mrf.mxu0
          %v841 = vadd.f32 0.0, %v840
          %v842 = vpop.f32.mrf.mxu0
          %v843 = vpop.f32.mrf.mxu0
          %v844 = vadd.f32 0.0, %v843
          %v845 = vpop.f32.mrf.mxu0
          %846 = vmatprep.mubr.bf16.mxu0 0
          %847 = vmatmul.mubr.bf16.gmra.mxu0 %v729
          %v848 = vpop.f32.mrf.mxu0
          %v849 = vadd.f32 0.0, %v848
          %v850 = vpop.f32.mrf.mxu0
          %v851 = vpop.f32.mrf.mxu0
          %v852 = vadd.f32 0.0, %v851
          %v853 = vpop.f32.mrf.mxu0
          %854 = vmatprep.mubr.bf16.mxu0 0
          %855 = vmatmul.mubr.bf16.gmra.mxu0 %v730
          %v856 = vpop.f32.mrf.mxu0
          %v857 = vadd.f32 0.0, %v856
          %v858 = vpop.f32.mrf.mxu0
          %v859 = vpop.f32.mrf.mxu0
          %v860 = vadd.f32 0.0, %v859
          %v861 = vpop.f32.mrf.mxu0
          %862 = vmatprep.mubr.bf16.mxu0 0
          %863 = vmatmul.mubr.bf16.gmra.mxu0 %v731
          %v864 = vpop.f32.mrf.mxu0
          %v865 = vadd.f32 0.0, %v864
          %v866 = vpop.f32.mrf.mxu0
          %v867 = vpop.f32.mrf.mxu0
          %v868 = vadd.f32 0.0, %v867
          %v869 = vpop.f32.mrf.mxu0
          %870 = vmatprep.mubr.bf16.mxu0 0
          %871 = vmatmul.mubr.bf16.gmra.mxu0 %v732
          %v872 = vpop.f32.mrf.mxu0
          %v873 = vadd.f32 0.0, %v872
          %v874 = vpop.f32.mrf.mxu0
          %v875 = vpop.f32.mrf.mxu0
          %v876 = vadd.f32 0.0, %v875
          %v877 = vpop.f32.mrf.mxu0
          %878 = vmatprep.mubr.bf16.mxu0 0
          %879 = vmatmul.mubr.bf16.gmra.mxu0 %v733
          %v880 = vpop.f32.mrf.mxu0
          %v881 = vadd.f32 0.0, %v880
          %v882 = vpop.f32.mrf.mxu0
          %v883 = vpop.f32.mrf.mxu0
          %v884 = vadd.f32 0.0, %v883
          %v885 = vpop.f32.mrf.mxu0
          %886 = vdwg.mxu0
          %v887 = vadd.f32 %v662, %v825
          %v888 = vadd.f32 %v663, %v828
          %v889 = vadd.f32 %v664, %v833
          %v890 = vadd.f32 %v665, %v836
          %v891 = vadd.f32 %v666, %v841
          %v892 = vadd.f32 %v667, %v844
          %v893 = vadd.f32 %v668, %v849
          %v894 = vadd.f32 %v669, %v852
          %v895 = vadd.f32 %v670, %v857
          %v896 = vadd.f32 %v671, %v860
          %v897 = vadd.f32 %v672, %v865
          %v898 = vadd.f32 %v673, %v868
          %v899 = vadd.f32 %v674, %v873
          %v900 = vadd.f32 %v675, %v876
          %v901 = vadd.f32 %v676, %v881
          %v902 = vadd.f32 %v677, %v884
          %903 = vst [vmem:[#allocation2] sm:$0xff] %v887
          %904 = vst [vmem:[#allocation2 + $0x8] sm:$0xff] %v888
          %905 = vst [vmem:[#allocation2 + $0x10] sm:$0xff] %v889
          %906 = vst [vmem:[#allocation2 + $0x18] sm:$0xff] %v890
          %907 = vst [vmem:[#allocation2 + $0x20] sm:$0xff] %v891
          %908 = vst [vmem:[#allocation2 + $0x28] sm:$0xff] %v892
          %909 = vst [vmem:[#allocation2 + $0x30] sm:$0xff] %v893
          %910 = vst [vmem:[#allocation2 + $0x38] sm:$0xff] %v894
          %911 = vst [vmem:[#allocation2 + $0x40] sm:$0xff] %v895
          %912 = vst [vmem:[#allocation2 + $0x48] sm:$0xff] %v896
          %913 = vst [vmem:[#allocation2 + $0x50] sm:$0xff] %v897
          %914 = vst [vmem:[#allocation2 + $0x58] sm:$0xff] %v898
          %915 = vst [vmem:[#allocation2 + $0x60] sm:$0xff] %v899
          %916 = vst [vmem:[#allocation2 + $0x68] sm:$0xff] %v900
          %917 = vst [vmem:[#allocation2 + $0x70] sm:$0xff] %v901
          %918 = vst [vmem:[#allocation2 + $0x78] sm:$0xff] %v902
        $region97: #{vgcl_forward.3} parent=84 // pred_fallthru
          _
        %p919 = scmp.eq.s32.totalorder %s39, 2
        // Predicated region
        $region98: #{vgcl_forward.3} parent=84 // pred_check
          %p920 = pneg %p919
        $region99: #{vgcl_forward.3} parent=84 // pred_check_branch
          %922 = sbr.rel (%p920) target = $region101
        $region100: #{vgcl_forward.3} parent=84 // pred_region
          %v923 = vld [vmem:[#allocation2] sm:$0xff]
          %v924 = vld [vmem:[#allocation2 + $0x8] sm:$0xff]
          %v925 = vld [vmem:[#allocation2 + $0x10] sm:$0xff]
          %v926 = vld [vmem:[#allocation2 + $0x18] sm:$0xff]
          %v927 = vld [vmem:[#allocation2 + $0x20] sm:$0xff]
          %v928 = vld [vmem:[#allocation2 + $0x28] sm:$0xff]
          %v929 = vld [vmem:[#allocation2 + $0x30] sm:$0xff]
          %v930 = vld [vmem:[#allocation2 + $0x38] sm:$0xff]
          %v931 = vld [vmem:[#allocation2 + $0x40] sm:$0xff]
          %v932 = vld [vmem:[#allocation2 + $0x48] sm:$0xff]
          %v933 = vld [vmem:[#allocation2 + $0x50] sm:$0xff]
          %v934 = vld [vmem:[#allocation2 + $0x58] sm:$0xff]
          %v935 = vld [vmem:[#allocation2 + $0x60] sm:$0xff]
          %v936 = vld [vmem:[#allocation2 + $0x68] sm:$0xff]
          %v937 = vld [vmem:[#allocation2 + $0x70] sm:$0xff]
          %v938 = vld [vmem:[#allocation2 + $0x78] sm:$0xff]
          %v939 = vld [vmem:[%s574] sm:$0xff]
          %v940 = vld [vmem:[%s574 + $0x8] sm:$0xff]
          %v941 = vld [vmem:[%s574 + $0x10] sm:$0xff]
          %v942 = vld [vmem:[%s574 + $0x18] sm:$0xff]
          %v943 = vld [vmem:[%s574 + $0x20] sm:$0xff]
          %v944 = vld [vmem:[%s574 + $0x28] sm:$0xff]
          %v945 = vld [vmem:[%s574 + $0x30] sm:$0xff]
          %v946 = vld [vmem:[%s574 + $0x38] sm:$0xff]
          %v947 = vld [vmem:[%s574 + $0x40] sm:$0xff]
          %v948 = vld [vmem:[%s574 + $0x48] sm:$0xff]
          %v949 = vld [vmem:[%s574 + $0x50] sm:$0xff]
          %v950 = vld [vmem:[%s574 + $0x58] sm:$0xff]
          %v951 = vld [vmem:[%s574 + $0x60] sm:$0xff]
          %v952 = vld [vmem:[%s574 + $0x68] sm:$0xff]
          %v953 = vld [vmem:[%s574 + $0x70] sm:$0xff]
          %v954 = vld [vmem:[%s574 + $0x78] sm:$0xff]
          %v955 = vadd.f32 %v939, %v923
          %v956 = vadd.f32 %v940, %v924
          %v957 = vadd.f32 %v941, %v925
          %v958 = vadd.f32 %v942, %v926
          %v959 = vadd.f32 %v943, %v927
          %v960 = vadd.f32 %v944, %v928
          %v961 = vadd.f32 %v945, %v929
          %v962 = vadd.f32 %v946, %v930
          %v963 = vadd.f32 %v947, %v931
          %v964 = vadd.f32 %v948, %v932
          %v965 = vadd.f32 %v949, %v933
          %v966 = vadd.f32 %v950, %v934
          %v967 = vadd.f32 %v951, %v935
          %v968 = vadd.f32 %v952, %v936
          %v969 = vadd.f32 %v953, %v937
          %v970 = vadd.f32 %v954, %v938
          %v971 = vmul.f32 %v955, 0.5
          %v972 = vmul.f32 %v956, 0.5
          %v973 = vmul.f32 %v957, 0.5
          %v974 = vmul.f32 %v958, 0.5
          %v975 = vmul.f32 %v959, 0.5
          %v976 = vmul.f32 %v960, 0.5
          %v977 = vmul.f32 %v961, 0.5
          %v978 = vmul.f32 %v962, 0.5
          %v979 = vmul.f32 %v963, 0.5
          %v980 = vmul.f32 %v964, 0.5
          %v981 = vmul.f32 %v965, 0.5
          %v982 = vmul.f32 %v966, 0.5
          %v983 = vmul.f32 %v967, 0.5
          %v984 = vmul.f32 %v968, 0.5
          %v985 = vmul.f32 %v969, 0.5
          %v986 = vmul.f32 %v970, 0.5
          %v987 = vpack.c.bf16 %v972, %v971
          %v988 = vpack.c.bf16 %v974, %v973
          %v989 = vpack.c.bf16 %v976, %v975
          %v990 = vpack.c.bf16 %v978, %v977
          %v991 = vpack.c.bf16 %v980, %v979
          %v992 = vpack.c.bf16 %v982, %v981
          %v993 = vpack.c.bf16 %v984, %v983
          %v994 = vpack.c.bf16 %v986, %v985
          %v995 = vld [vmem:[%s5] sm:$0xf]
          %v996 = vld [vmem:[%s5 + $0x4] sm:$0xf]
          %v997 = vld [vmem:[%s5 + $0x8] sm:$0xf]
          %v998 = vld [vmem:[%s5 + $0xc] sm:$0xf]
          %v999 = vld [vmem:[%s5 + $0x10] sm:$0xf]
          %v1000 = vld [vmem:[%s5 + $0x14] sm:$0xf]
          %v1001 = vld [vmem:[%s5 + $0x18] sm:$0xf]
          %v1002 = vld [vmem:[%s5 + $0x1c] sm:$0xf]
          %v1003 = vld [vmem:[%s5 + $0x20] sm:$0xf]
          %v1004 = vld [vmem:[%s5 + $0x24] sm:$0xf]
          %v1005 = vld [vmem:[%s5 + $0x28] sm:$0xf]
          %v1006 = vld [vmem:[%s5 + $0x2c] sm:$0xf]
          %v1007 = vld [vmem:[%s5 + $0x30] sm:$0xf]
          %v1008 = vld [vmem:[%s5 + $0x34] sm:$0xf]
          %v1009 = vld [vmem:[%s5 + $0x38] sm:$0xf]
          %v1010 = vld [vmem:[%s5 + $0x3c] sm:$0xf]
          %v1011 = vld [vmem:[%s6] sm:$0x1]
          %v1013 = vlaneseq
          %v1014 = vshrl.u32 %v1013, 7
          %v1015 = vsub.s32 0, %v1014
          %v1016 = vrot.slane %v1011, %v1015
          %v1034 = vunpack.c.l.b16 %v995
          %v1035 = vunpack.c.l.b16 %v996
          %v1036 = vunpack.c.l.b16 %v997
          %v1037 = vunpack.c.l.b16 %v998
          %v1038 = vunpack.c.l.b16 %v999
          %v1039 = vunpack.c.l.b16 %v1000
          %v1040 = vunpack.c.l.b16 %v1001
          %v1041 = vunpack.c.l.b16 %v1002
          %v1042 = vunpack.c.l.b16 %v1003
          %v1043 = vunpack.c.l.b16 %v1004
          %v1044 = vunpack.c.l.b16 %v1005
          %v1045 = vunpack.c.l.b16 %v1006
          %v1046 = vunpack.c.l.b16 %v1007
          %v1047 = vunpack.c.l.b16 %v1008
          %v1048 = vunpack.c.l.b16 %v1009
          %v1049 = vunpack.c.l.b16 %v1010
          %v1050 = vpack.c.b16 %v1035, %v1034
          %v1051 = vpack.c.b16 %v1037, %v1036
          %v1052 = vpack.c.b16 %v1039, %v1038
          %v1053 = vpack.c.b16 %v1041, %v1040
          %v1054 = vpack.c.b16 %v1043, %v1042
          %v1055 = vpack.c.b16 %v1045, %v1044
          %v1056 = vpack.c.b16 %v1047, %v1046
          %v1057 = vpack.c.b16 %v1049, %v1048
          %1066 = vmatprep.subr.bf16.mxu0 0
          %1067 = vmatpush1.bf16.msra.mxu0 %v1057
          %1068 = vmatprep.subr.bf16.mxu0 0
          %1069 = vmatpush1.bf16.msra.mxu0 %v1056
          %1070 = vmatprep.subr.bf16.mxu0 0
          %1071 = vmatpush1.bf16.msra.mxu0 %v1055
          %1072 = vmatprep.subr.bf16.mxu0 0
          %1073 = vmatpush1.bf16.msra.mxu0 %v1054
          %1074 = vmatprep.subr.bf16.mxu0 0
          %1075 = vmatpush1.bf16.msra.mxu0 %v1053
          %1076 = vmatprep.subr.bf16.mxu0 0
          %1077 = vmatpush1.bf16.msra.mxu0 %v1052
          %1078 = vmatprep.subr.bf16.mxu0 0
          %1079 = vmatpush1.bf16.msra.mxu0 %v1051
          %1080 = vmatprep.subr.bf16.mxu0 0
          %1081 = vmatpush1.bf16.msra.mxu0 %v1050
          %1082 = vmatprep.subr.bf16.mxu0 0
          %1083 = vmatpush2.bf16.msra.mxu0 0
          %1084 = vmatprep.subr.bf16.mxu0 0
          %1085 = vmatpush2.bf16.msra.mxu0 0
          %1086 = vmatprep.subr.bf16.mxu0 0
          %1087 = vmatpush2.bf16.msra.mxu0 0
          %1088 = vmatprep.subr.bf16.mxu0 0
          %1089 = vmatpush2.bf16.msra.mxu0 0
          %1090 = vmatprep.subr.bf16.mxu0 0
          %1091 = vmatpush2.bf16.msra.mxu0 0
          %1092 = vmatprep.subr.bf16.mxu0 0
          %1093 = vmatpush2.bf16.msra.mxu0 0
          %1094 = vmatprep.subr.bf16.mxu0 0
          %1095 = vmatpush2.bf16.msra.mxu0 0
          %1096 = vmatprep.subr.bf16.mxu0 0
          %1097 = vmatpush2.bf16.msra.mxu0 0
          %1098 = vmatprep.mubr.bf16.mxu0 0
          %1099 = vmatmul.mubr.bf16.gmra.mxu0 %v987
          %v1100 = vpop.f32.mrf.mxu0
          %v1101 = vadd.f32 %v1016, %v1100
          %v1102 = vpop.f32.mrf.mxu0
          %v1103 = vpop.f32.mrf.mxu0
          %v1104 = vadd.f32 %v1016, %v1103
          %v1105 = vpop.f32.mrf.mxu0
          %1106 = vmatprep.mubr.bf16.mxu0 0
          %1107 = vmatmul.mubr.bf16.gmra.mxu0 %v988
          %v1108 = vpop.f32.mrf.mxu0
          %v1109 = vadd.f32 %v1016, %v1108
          %v1110 = vpop.f32.mrf.mxu0
          %v1111 = vpop.f32.mrf.mxu0
          %v1112 = vadd.f32 %v1016, %v1111
          %v1113 = vpop.f32.mrf.mxu0
          %1114 = vmatprep.mubr.bf16.mxu0 0
          %1115 = vmatmul.mubr.bf16.gmra.mxu0 %v989
          %v1116 = vpop.f32.mrf.mxu0
          %v1117 = vadd.f32 %v1016, %v1116
          %v1118 = vpop.f32.mrf.mxu0
          %v1119 = vpop.f32.mrf.mxu0
          %v1120 = vadd.f32 %v1016, %v1119
          %v1121 = vpop.f32.mrf.mxu0
          %1122 = vmatprep.mubr.bf16.mxu0 0
          %1123 = vmatmul.mubr.bf16.gmra.mxu0 %v990
          %v1124 = vpop.f32.mrf.mxu0
          %v1125 = vadd.f32 %v1016, %v1124
          %v1126 = vpop.f32.mrf.mxu0
          %v1127 = vpop.f32.mrf.mxu0
          %v1128 = vadd.f32 %v1016, %v1127
          %v1129 = vpop.f32.mrf.mxu0
          %1130 = vmatprep.mubr.bf16.mxu0 0
          %1131 = vmatmul.mubr.bf16.gmra.mxu0 %v991
          %v1132 = vpop.f32.mrf.mxu0
          %v1133 = vadd.f32 %v1016, %v1132
          %v1134 = vpop.f32.mrf.mxu0
          %v1135 = vpop.f32.mrf.mxu0
          %v1136 = vadd.f32 %v1016, %v1135
          %v1137 = vpop.f32.mrf.mxu0
          %1138 = vmatprep.mubr.bf16.mxu0 0
          %1139 = vmatmul.mubr.bf16.gmra.mxu0 %v992
          %v1140 = vpop.f32.mrf.mxu0
          %v1141 = vadd.f32 %v1016, %v1140
          %v1142 = vpop.f32.mrf.mxu0
          %v1143 = vpop.f32.mrf.mxu0
          %v1144 = vadd.f32 %v1016, %v1143
          %v1145 = vpop.f32.mrf.mxu0
          %1146 = vmatprep.mubr.bf16.mxu0 0
          %1147 = vmatmul.mubr.bf16.gmra.mxu0 %v993
          %v1148 = vpop.f32.mrf.mxu0
          %v1149 = vadd.f32 %v1016, %v1148
          %v1150 = vpop.f32.mrf.mxu0
          %v1151 = vpop.f32.mrf.mxu0
          %v1152 = vadd.f32 %v1016, %v1151
          %v1153 = vpop.f32.mrf.mxu0
          %1154 = vmatprep.mubr.bf16.mxu0 0
          %1155 = vmatmul.mubr.bf16.gmra.mxu0 %v994
          %v1156 = vpop.f32.mrf.mxu0
          %v1157 = vadd.f32 %v1016, %v1156
          %v1158 = vpop.f32.mrf.mxu0
          %v1159 = vpop.f32.mrf.mxu0
          %v1160 = vadd.f32 %v1016, %v1159
          %v1161 = vpop.f32.mrf.mxu0
          %1162 = vdwg.mxu0
          %v1163 = vmul.f32 %v1101, 1.442695
          %v1164 = vpow.pop %v1163
          %v1165 = vmul.f32 %v1104, 1.442695
          %v1166 = vpow.pop %v1165
          %v1167 = vmul.f32 %v1109, 1.442695
          %v1168 = vpow.pop %v1167
          %v1169 = vmul.f32 %v1112, 1.442695
          %v1170 = vpow.pop %v1169
          %v1171 = vmul.f32 %v1117, 1.442695
          %v1172 = vpow.pop %v1171
          %v1173 = vmul.f32 %v1120, 1.442695
          %v1174 = vpow.pop %v1173
          %v1175 = vmul.f32 %v1125, 1.442695
          %v1176 = vpow.pop %v1175
          %v1177 = vmul.f32 %v1128, 1.442695
          %v1178 = vpow.pop %v1177
          %v1179 = vmul.f32 %v1133, 1.442695
          %v1180 = vpow.pop %v1179
          %v1181 = vmul.f32 %v1136, 1.442695
          %v1182 = vpow.pop %v1181
          %v1183 = vmul.f32 %v1141, 1.442695
          %v1184 = vpow.pop %v1183
          %v1185 = vmul.f32 %v1144, 1.442695
          %v1186 = vpow.pop %v1185
          %v1187 = vmul.f32 %v1149, 1.442695
          %v1188 = vpow.pop %v1187
          %v1189 = vmul.f32 %v1152, 1.442695
          %v1190 = vpow.pop %v1189
          %v1191 = vmul.f32 %v1157, 1.442695
          %v1192 = vpow.pop %v1191
          %v1193 = vmul.f32 %v1160, 1.442695
          %v1194 = vpow.pop %v1193
          %v1195 = vmul.f32 %v1164, 0.01
          %v1196 = vmul.f32 %v1166, 0.01
          %v1197 = vmul.f32 %v1168, 0.01
          %v1198 = vmul.f32 %v1170, 0.01
          %v1199 = vmul.f32 %v1172, 0.01
          %v1200 = vmul.f32 %v1174, 0.01
          %v1201 = vmul.f32 %v1176, 0.01
          %v1202 = vmul.f32 %v1178, 0.01
          %v1203 = vmul.f32 %v1180, 0.01
          %v1204 = vmul.f32 %v1182, 0.01
          %v1205 = vmul.f32 %v1184, 0.01
          %v1206 = vmul.f32 %v1186, 0.01
          %v1207 = vmul.f32 %v1188, 0.01
          %v1208 = vmul.f32 %v1190, 0.01
          %v1209 = vmul.f32 %v1192, 0.01
          %v1210 = vmul.f32 %v1194, 0.01
          %v1211 = vld [vmem:[%s580] sm:$0xf]
          %v1212 = vld [vmem:[%s580 + $0x4] sm:$0xf]
          %v1213 = vld [vmem:[%s580 + $0x8] sm:$0xf]
          %v1214 = vld [vmem:[%s580 + $0xc] sm:$0xf]
          %v1215 = vld [vmem:[%s580 + $0x10] sm:$0xf]
          %v1216 = vld [vmem:[%s580 + $0x14] sm:$0xf]
          %v1217 = vld [vmem:[%s580 + $0x18] sm:$0xf]
          %v1218 = vld [vmem:[%s580 + $0x1c] sm:$0xf]
          %v1219 = vld [vmem:[%s580 + $0x20] sm:$0xf]
          %v1220 = vld [vmem:[%s580 + $0x24] sm:$0xf]
          %v1221 = vld [vmem:[%s580 + $0x28] sm:$0xf]
          %v1222 = vld [vmem:[%s580 + $0x2c] sm:$0xf]
          %v1223 = vld [vmem:[%s580 + $0x30] sm:$0xf]
          %v1224 = vld [vmem:[%s580 + $0x34] sm:$0xf]
          %v1225 = vld [vmem:[%s580 + $0x38] sm:$0xf]
          %v1226 = vld [vmem:[%s580 + $0x3c] sm:$0xf]
          %v1227 = vunpack.c.l.bf16 %v1211
          %v1228 = vunpack.c.l.bf16 %v1212
          %v1229 = vunpack.c.l.bf16 %v1213
          %v1230 = vunpack.c.l.bf16 %v1214
          %v1231 = vunpack.c.l.bf16 %v1215
          %v1232 = vunpack.c.l.bf16 %v1216
          %v1233 = vunpack.c.l.bf16 %v1217
          %v1234 = vunpack.c.l.bf16 %v1218
          %v1235 = vunpack.c.l.bf16 %v1219
          %v1236 = vunpack.c.l.bf16 %v1220
          %v1237 = vunpack.c.l.bf16 %v1221
          %v1238 = vunpack.c.l.bf16 %v1222
          %v1239 = vunpack.c.l.bf16 %v1223
          %v1240 = vunpack.c.l.bf16 %v1224
          %v1241 = vunpack.c.l.bf16 %v1225
          %v1242 = vunpack.c.l.bf16 %v1226
          %v1243 = vmul.f32 %v1195, %v1227
          %v1244 = vmul.f32 %v1196, %v1228
          %v1245 = vmul.f32 %v1197, %v1229
          %v1246 = vmul.f32 %v1198, %v1230
          %v1247 = vmul.f32 %v1199, %v1231
          %v1248 = vmul.f32 %v1200, %v1232
          %v1249 = vmul.f32 %v1201, %v1233
          %v1250 = vmul.f32 %v1202, %v1234
          %v1251 = vmul.f32 %v1203, %v1235
          %v1252 = vmul.f32 %v1204, %v1236
          %v1253 = vmul.f32 %v1205, %v1237
          %v1254 = vmul.f32 %v1206, %v1238
          %v1255 = vmul.f32 %v1207, %v1239
          %v1256 = vmul.f32 %v1208, %v1240
          %v1257 = vmul.f32 %v1209, %v1241
          %v1258 = vmul.f32 %v1210, %v1242
          %v1259 = vadd.f32 %v971, %v1243
          %v1260 = vadd.f32 %v972, %v1244
          %v1261 = vadd.f32 %v973, %v1245
          %v1262 = vadd.f32 %v974, %v1246
          %v1263 = vadd.f32 %v975, %v1247
          %v1264 = vadd.f32 %v976, %v1248
          %v1265 = vadd.f32 %v977, %v1249
          %v1266 = vadd.f32 %v978, %v1250
          %v1267 = vadd.f32 %v979, %v1251
          %v1268 = vadd.f32 %v980, %v1252
          %v1269 = vadd.f32 %v981, %v1253
          %v1270 = vadd.f32 %v982, %v1254
          %v1271 = vadd.f32 %v983, %v1255
          %v1272 = vadd.f32 %v984, %v1256
          %v1273 = vadd.f32 %v985, %v1257
          %v1274 = vadd.f32 %v986, %v1258
          %1275 = vst [vmem:[%s592] sm:$0xff] %v1259
          %1276 = vst [vmem:[%s592 + $0x8] sm:$0xff] %v1260
          %1277 = vst [vmem:[%s592 + $0x10] sm:$0xff] %v1261
          %1278 = vst [vmem:[%s592 + $0x18] sm:$0xff] %v1262
          %1279 = vst [vmem:[%s592 + $0x20] sm:$0xff] %v1263
          %1280 = vst [vmem:[%s592 + $0x28] sm:$0xff] %v1264
          %1281 = vst [vmem:[%s592 + $0x30] sm:$0xff] %v1265
          %1282 = vst [vmem:[%s592 + $0x38] sm:$0xff] %v1266
          %1283 = vst [vmem:[%s592 + $0x40] sm:$0xff] %v1267
          %1284 = vst [vmem:[%s592 + $0x48] sm:$0xff] %v1268
          %1285 = vst [vmem:[%s592 + $0x50] sm:$0xff] %v1269
          %1286 = vst [vmem:[%s592 + $0x58] sm:$0xff] %v1270
          %1287 = vst [vmem:[%s592 + $0x60] sm:$0xff] %v1271
          %1288 = vst [vmem:[%s592 + $0x68] sm:$0xff] %v1272
          %1289 = vst [vmem:[%s592 + $0x70] sm:$0xff] %v1273
          %1290 = vst [vmem:[%s592 + $0x78] sm:$0xff] %v1274
          %v1291 = vld [vmem:[%s586] sm:$0xf]
          %v1292 = vld [vmem:[%s586 + $0x4] sm:$0xf]
          %v1293 = vld [vmem:[%s586 + $0x8] sm:$0xf]
          %v1294 = vld [vmem:[%s586 + $0xc] sm:$0xf]
          %v1295 = vld [vmem:[%s586 + $0x10] sm:$0xf]
          %v1296 = vld [vmem:[%s586 + $0x14] sm:$0xf]
          %v1297 = vld [vmem:[%s586 + $0x18] sm:$0xf]
          %v1298 = vld [vmem:[%s586 + $0x1c] sm:$0xf]
          %v1299 = vld [vmem:[%s586 + $0x20] sm:$0xf]
          %v1300 = vld [vmem:[%s586 + $0x24] sm:$0xf]
          %v1301 = vld [vmem:[%s586 + $0x28] sm:$0xf]
          %v1302 = vld [vmem:[%s586 + $0x2c] sm:$0xf]
          %v1303 = vld [vmem:[%s586 + $0x30] sm:$0xf]
          %v1304 = vld [vmem:[%s586 + $0x34] sm:$0xf]
          %v1305 = vld [vmem:[%s586 + $0x38] sm:$0xf]
          %v1306 = vld [vmem:[%s586 + $0x3c] sm:$0xf]
          %v1307 = vunpack.c.l.bf16 %v1291
          %v1308 = vunpack.c.l.bf16 %v1292
          %v1309 = vunpack.c.l.bf16 %v1293
          %v1310 = vunpack.c.l.bf16 %v1294
          %v1311 = vunpack.c.l.bf16 %v1295
          %v1312 = vunpack.c.l.bf16 %v1296
          %v1313 = vunpack.c.l.bf16 %v1297
          %v1314 = vunpack.c.l.bf16 %v1298
          %v1315 = vunpack.c.l.bf16 %v1299
          %v1316 = vunpack.c.l.bf16 %v1300
          %v1317 = vunpack.c.l.bf16 %v1301
          %v1318 = vunpack.c.l.bf16 %v1302
          %v1319 = vunpack.c.l.bf16 %v1303
          %v1320 = vunpack.c.l.bf16 %v1304
          %v1321 = vunpack.c.l.bf16 %v1305
          %v1322 = vunpack.c.l.bf16 %v1306
          %v1323 = vmul.f32 %v1195, %v1307
          %v1324 = vmul.f32 %v1196, %v1308
          %v1325 = vmul.f32 %v1197, %v1309
          %v1326 = vmul.f32 %v1198, %v1310
          %v1327 = vmul.f32 %v1199, %v1311
          %v1328 = vmul.f32 %v1200, %v1312
          %v1329 = vmul.f32 %v1201, %v1313
          %v1330 = vmul.f32 %v1202, %v1314
          %v1331 = vmul.f32 %v1203, %v1315
          %v1332 = vmul.f32 %v1204, %v1316
          %v1333 = vmul.f32 %v1205, %v1317
          %v1334 = vmul.f32 %v1206, %v1318
          %v1335 = vmul.f32 %v1207, %v1319
          %v1336 = vmul.f32 %v1208, %v1320
          %v1337 = vmul.f32 %v1209, %v1321
          %v1338 = vmul.f32 %v1210, %v1322
          %v1339 = vadd.f32 %v971, %v1323
          %v1340 = vadd.f32 %v972, %v1324
          %v1341 = vadd.f32 %v973, %v1325
          %v1342 = vadd.f32 %v974, %v1326
          %v1343 = vadd.f32 %v975, %v1327
          %v1344 = vadd.f32 %v976, %v1328
          %v1345 = vadd.f32 %v977, %v1329
          %v1346 = vadd.f32 %v978, %v1330
          %v1347 = vadd.f32 %v979, %v1331
          %v1348 = vadd.f32 %v980, %v1332
          %v1349 = vadd.f32 %v981, %v1333
          %v1350 = vadd.f32 %v982, %v1334
          %v1351 = vadd.f32 %v983, %v1335
          %v1352 = vadd.f32 %v984, %v1336
          %v1353 = vadd.f32 %v985, %v1337
          %v1354 = vadd.f32 %v986, %v1338
          %1355 = vst [vmem:[%s598] sm:$0xff] %v1339
          %1356 = vst [vmem:[%s598 + $0x8] sm:$0xff] %v1340
          %1357 = vst [vmem:[%s598 + $0x10] sm:$0xff] %v1341
          %1358 = vst [vmem:[%s598 + $0x18] sm:$0xff] %v1342
          %1359 = vst [vmem:[%s598 + $0x20] sm:$0xff] %v1343
          %1360 = vst [vmem:[%s598 + $0x28] sm:$0xff] %v1344
          %1361 = vst [vmem:[%s598 + $0x30] sm:$0xff] %v1345
          %1362 = vst [vmem:[%s598 + $0x38] sm:$0xff] %v1346
          %1363 = vst [vmem:[%s598 + $0x40] sm:$0xff] %v1347
          %1364 = vst [vmem:[%s598 + $0x48] sm:$0xff] %v1348
          %1365 = vst [vmem:[%s598 + $0x50] sm:$0xff] %v1349
          %1366 = vst [vmem:[%s598 + $0x58] sm:$0xff] %v1350
          %1367 = vst [vmem:[%s598 + $0x60] sm:$0xff] %v1351
          %1368 = vst [vmem:[%s598 + $0x68] sm:$0xff] %v1352
          %1369 = vst [vmem:[%s598 + $0x70] sm:$0xff] %v1353
          %1370 = vst [vmem:[%s598 + $0x78] sm:$0xff] %v1354
          %1371 = vst [vmem:[%s604] sm:$0xff] %v971
          %1372 = vst [vmem:[%s604 + $0x8] sm:$0xff] %v972
          %1373 = vst [vmem:[%s604 + $0x10] sm:$0xff] %v973
          %1374 = vst [vmem:[%s604 + $0x18] sm:$0xff] %v974
          %1375 = vst [vmem:[%s604 + $0x20] sm:$0xff] %v975
          %1376 = vst [vmem:[%s604 + $0x28] sm:$0xff] %v976
          %1377 = vst [vmem:[%s604 + $0x30] sm:$0xff] %v977
          %1378 = vst [vmem:[%s604 + $0x38] sm:$0xff] %v978
          %1379 = vst [vmem:[%s604 + $0x40] sm:$0xff] %v979
          %1380 = vst [vmem:[%s604 + $0x48] sm:$0xff] %v980
          %1381 = vst [vmem:[%s604 + $0x50] sm:$0xff] %v981
          %1382 = vst [vmem:[%s604 + $0x58] sm:$0xff] %v982
          %1383 = vst [vmem:[%s604 + $0x60] sm:$0xff] %v983
          %1384 = vst [vmem:[%s604 + $0x68] sm:$0xff] %v984
          %1385 = vst [vmem:[%s604 + $0x70] sm:$0xff] %v985
          %1386 = vst [vmem:[%s604 + $0x78] sm:$0xff] %v986
          %1387 = vst [vmem:[%s610] sm:$0xff] %v1164
          %1388 = vst [vmem:[%s610 + $0x8] sm:$0xff] %v1166
          %1389 = vst [vmem:[%s610 + $0x10] sm:$0xff] %v1168
          %1390 = vst [vmem:[%s610 + $0x18] sm:$0xff] %v1170
          %1391 = vst [vmem:[%s610 + $0x20] sm:$0xff] %v1172
          %1392 = vst [vmem:[%s610 + $0x28] sm:$0xff] %v1174
          %1393 = vst [vmem:[%s610 + $0x30] sm:$0xff] %v1176
          %1394 = vst [vmem:[%s610 + $0x38] sm:$0xff] %v1178
          %1395 = vst [vmem:[%s610 + $0x40] sm:$0xff] %v1180
          %1396 = vst [vmem:[%s610 + $0x48] sm:$0xff] %v1182
          %1397 = vst [vmem:[%s610 + $0x50] sm:$0xff] %v1184
          %1398 = vst [vmem:[%s610 + $0x58] sm:$0xff] %v1186
          %1399 = vst [vmem:[%s610 + $0x60] sm:$0xff] %v1188
          %1400 = vst [vmem:[%s610 + $0x68] sm:$0xff] %v1190
          %1401 = vst [vmem:[%s610 + $0x70] sm:$0xff] %v1192
          %1402 = vst [vmem:[%s610 + $0x78] sm:$0xff] %v1194
        $region101: #{vgcl_forward.3} parent=84 // pred_fallthru
          _
        %s1403 = smul.u32 16, %s38
        %p1404 = scmp.lt.s32.totalorder %s1403, 47
        %s1405 = scalar_select %p1404, %s1403, 47
        %s1406 = smul.addr %s1405, 8
        %s1407 = scalar_lea.vmem %s9, %s1406
        %s1408 = smul.u32 16, %s38
        %p1409 = scmp.lt.s32.totalorder %s1408, 47
        %s1410 = scalar_select %p1409, %s1408, 47
        %s1411 = smul.addr %s1410, 8
        %s1412 = scalar_lea.vmem %s10, %s1411
        %s1413 = smul.u32 16, %s38
        %p1414 = scmp.lt.s32.totalorder %s1413, 47
        %s1415 = scalar_select %p1414, %s1413, 47
        %s1416 = smul.addr %s1415, 8
        %s1417 = scalar_lea.vmem %s11, %s1416
        %s1418 = smul.u32 16, %s38
        %p1419 = scmp.lt.s32.totalorder %s1418, 47
        %s1420 = scalar_select %p1419, %s1418, 47
        %s1421 = smul.addr %s1420, 8
        %s1422 = scalar_lea.vmem %s12, %s1421
        // Predicated region
        $region102: #{vgcl_forward.3} parent=84 // pred_check
          %p1423 = pneg %p239
        $region103: #{vgcl_forward.3} parent=84 // pred_check_branch
          %1425 = sbr.rel (%p1423) target = $region105
        $region104: #{vgcl_forward.3} parent=84 // pred_region
          %s1426 = smul.u32 16, %s38
        $region105: #{vgcl_forward.3} parent=84 // pred_fallthru
          _
        // Predicated region
        $region106: #{vgcl_forward.3} parent=84 // pred_check
          %p1427 = pneg %p265
        $region107: #{vgcl_forward.3} parent=84 // pred_check_branch
          %1429 = sbr.rel (%p1427) target = $region109
        $region108: #{vgcl_forward.3} parent=84 // pred_region
          %s1430 = smul.u32 16, %s38
        $region109: #{vgcl_forward.3} parent=84 // pred_fallthru
          _
        // Predicated region
        $region110: #{vgcl_forward.3} parent=84 // pred_check
          %p1431 = pneg %p291
        $region111: #{vgcl_forward.3} parent=84 // pred_check_branch
          %1433 = sbr.rel (%p1431) target = $region113
        $region112: #{vgcl_forward.3} parent=84 // pred_region
          %s1434 = smul.u32 16, %s38
        $region113: #{vgcl_forward.3} parent=84 // pred_fallthru
          _
        // Predicated region
        $region114: #{vgcl_forward.3} parent=84 // pred_check
          %p1435 = pneg %p317
        $region115: #{vgcl_forward.3} parent=84 // pred_check_branch
          %1437 = sbr.rel (%p1435) target = $region117
        $region116: #{vgcl_forward.3} parent=84 // pred_region
          %s1438 = smul.u32 16, %s38
        $region117: #{vgcl_forward.3} parent=84 // pred_fallthru
          _
      $region85: #{vgcl_forward.3} parent=5 // pred_fallthru
        _
      %p1439 = scmp.le.s32.totalorder 2, %s29
      // Predicated region
      $region118: #{vgcl_forward.3} parent=5 // pred_check
        %p1440 = pneg %p1439
      $region119: #{vgcl_forward.3} parent=5 // pred_check_branch
        %1442 = sbr.rel (%p1440) target = $region121
      $region120: #{vgcl_forward.3} parent=5 // pred_region
        %s1443 = ssub.s32 %s29, 2
        // Predicated region
        $region122: #{vgcl_forward.3} parent=120 // pred_check
          %p1444 = pneg %p245
        $region123: #{vgcl_forward.3} parent=120 // pred_check_branch
          %1446 = sbr.rel (%p1444) target = $region125
        $region124: #{vgcl_forward.3} parent=120 // pred_region
          %s1447 = smul.u32 16, %s40
          %p1448 = scmp.lt.s32.totalorder %s1447, 47
          %s1449 = scalar_select %p1448, %s1447, 47
          %s1450 = smul.addr %s1449, 8
          %s1451 = scalar_lea.vmem %s9, %s1450
        $region125: #{vgcl_forward.3} parent=120 // pred_fallthru
          _
        // Predicated region
        $region126: #{vgcl_forward.3} parent=120 // pred_check
          %p1452 = pneg %p271
        $region127: #{vgcl_forward.3} parent=120 // pred_check_branch
          %1454 = sbr.rel (%p1452) target = $region129
        $region128: #{vgcl_forward.3} parent=120 // pred_region
          %s1455 = smul.u32 16, %s40
          %p1456 = scmp.lt.s32.totalorder %s1455, 47
          %s1457 = scalar_select %p1456, %s1455, 47
          %s1458 = smul.addr %s1457, 8
          %s1459 = scalar_lea.vmem %s10, %s1458
        $region129: #{vgcl_forward.3} parent=120 // pred_fallthru
          _
        // Predicated region
        $region130: #{vgcl_forward.3} parent=120 // pred_check
          %p1460 = pneg %p297
        $region131: #{vgcl_forward.3} parent=120 // pred_check_branch
          %1462 = sbr.rel (%p1460) target = $region133
        $region132: #{vgcl_forward.3} parent=120 // pred_region
          %s1463 = smul.u32 16, %s40
          %p1464 = scmp.lt.s32.totalorder %s1463, 47
          %s1465 = scalar_select %p1464, %s1463, 47
          %s1466 = smul.addr %s1465, 8
          %s1467 = scalar_lea.vmem %s11, %s1466
        $region133: #{vgcl_forward.3} parent=120 // pred_fallthru
          _
        // Predicated region
        $region134: #{vgcl_forward.3} parent=120 // pred_check
          %p1468 = pneg %p323
        $region135: #{vgcl_forward.3} parent=120 // pred_check_branch
          %1470 = sbr.rel (%p1468) target = $region137
        $region136: #{vgcl_forward.3} parent=120 // pred_region
          %s1471 = smul.u32 16, %s40
          %p1472 = scmp.lt.s32.totalorder %s1471, 47
          %s1473 = scalar_select %p1472, %s1471, 47
          %s1474 = smul.addr %s1473, 8
          %s1475 = scalar_lea.vmem %s12, %s1474
        $region137: #{vgcl_forward.3} parent=120 // pred_fallthru
          _
      $region121: #{vgcl_forward.3} parent=5 // pred_fallthru
        _
    $region6: #{vgcl_forward.3} parent=1 // loop_footer
      %s33 = sadd.s32 1, %s29
    $region7: #{vgcl_forward.3} parent=1 // loop_footer_branch
      %28 = sbr.rel target = $region3
    $region8: #{vgcl_forward.3} parent=1 // loop_exit
      _

</llo_original>
